<compile_context>
chip_gen: v6e
topology: v6e:2x2x1
jax: 0.10.0
libtpu: 0.0.40
codegen_flags: <defaults>
</compile_context>

<pallas_src>
import functools

import jax
import jax.numpy as jnp
from jax.experimental import pallas as pl
from jax.experimental.pallas import tpu as pltpu

HIDDEN_SZ = 20          # logical hidden size (from the module)
HPAD = 24               # per-gate padded hidden size (multiple of 8, f32 sublane aligned)
GPAD = 4 * HPAD         # padded gate rows (= 96)
LANE = 128


def _round_up(x, m):
    return ((x + m - 1) // m) * m


def _choose_tiling(n, block_n=None):
    """Pick the lane tile (bn) and padded batch (npad) for a batch of n."""
    npad_lane = _round_up(max(int(n), 1), LANE)
    if block_n is None:
        # >=2 grid tiles when possible (v7x: two TensorCores via "parallel"
        # dimension semantics; also gives the pipeline something to overlap),
        # capped at 4096 lanes so double-buffered tiles + gate intermediates
        # stay well under v5e's default scoped-VMEM and v7x's 64 MiB physical.
        bn = min(4096, max(LANE, _round_up(npad_lane // 2, LANE)))
    else:
        bn = _round_up(min(int(block_n), npad_lane), LANE)
    npad = _round_up(int(n), bn)
    return bn, npad


# --------------------------------------------------------------------------- #
# Kernel
# --------------------------------------------------------------------------- #
def optimizer_kernel(
    x_ref, h0_ref, c0_ref, h1_ref, c1_ref,
    wih1_ref, whh1_ref, b1_ref, wih2_ref, whh2_ref, b2_ref, wout_ref, bout_ref,
    out_ref, h0o_ref, c0o_ref, h1o_ref, c1o_ref,
):
    HP = h0_ref.shape[0]

    def sigmoid(x):
        # One EUP op (tanh) per sigmoid instead of exp + divide.
        return 0.5 * (jnp.tanh(0.5 * x) + 1.0)

    def gates_to_hc(gates, c_prev):
        # PyTorch LSTMCell gate order: i, f, g, o.  Slices are sublane-aligned
        # (offsets 0/24/48/72); pad rows stay exactly zero because the packed
        # weights/biases/states have zero pad rows/cols.
        i = sigmoid(gates[0 * HP:1 * HP])
        f = sigmoid(gates[1 * HP:2 * HP])
        g = jnp.tanh(gates[2 * HP:3 * HP])
        o = sigmoid(gates[3 * HP:4 * HP])
        c_new = f * c_prev + i * g
        h_new = o * jnp.tanh(c_new)
        return h_new, c_new

    x = x_ref[...]          # [1, BN]
    h0 = h0_ref[...]        # [HP, BN]
    c0 = c0_ref[...]
    h1 = h1_ref[...]
    c1 = c1_ref[...]

    # ---- LSTMCell 2 recurrent term first: independent of cell 1, so the MXU
    #      overlaps cell-1's EUP (tanh) chain. --------------------------------
    g2_hh = jnp.dot(whh2_ref[...], h1, preferred_element_type=jnp.float32)

    # ---- LSTMCell 1 (input_size = 1): K=1 "matmul" is a broadcast product ----
    gates1 = (wih1_ref[...] * x                                        # [4HP,1]*[1,BN]
              + jnp.dot(whh1_ref[...], h0,
                        preferred_element_type=jnp.float32)            # [4HP,HP]@[HP,BN]
              + b1_ref[...])                                           # [4HP,1]
    h0n, c0n = gates_to_hc(gates1, c0)

    # ---- LSTMCell 2: two K=HP dots (no concat copy) --------------------------
    gates2 = (jnp.dot(wih2_ref[...], h0n,
                      preferred_element_type=jnp.float32)              # [4HP,HP]@[HP,BN]
              + g2_hh + b2_ref[...])
    h1n, c1n = gates_to_hc(gates2, c1)

    # ---- Output linear (20 -> 1): lane-wise multiply + sublane reduction ----
    out = (jnp.sum(wout_ref[...] * h1n, axis=0, keepdims=True)         # [1, BN]
           + bout_ref[...])

    out_ref[...] = out.astype(out_ref.dtype)
    h0o_ref[...] = h0n.astype(h0o_ref.dtype)
    c0o_ref[...] = c0n.astype(c0o_ref.dtype)
    h1o_ref[...] = h1n.astype(h1o_ref.dtype)
    c1o_ref[...] = c1n.astype(c1o_ref.dtype)


# --------------------------------------------------------------------------- #
# One-time weight packing (hoisted out of the forward pass)
# --------------------------------------------------------------------------- #
def pack_params(params, hidden_sz=HIDDEN_SZ, hpad=HPAD):
    """Transpose/pad/fuse the PyTorch-layout weights once.

    Gate rows are padded 20->24 per gate (offsets 0/24/48/72); contraction
    columns are padded 20->24 with zeros; LSTM biases are pre-summed; cell-2
    input/recurrent weights are kept separate (two dots in the kernel).
    """
    H, HP = hidden_sz, hpad
    f32 = lambda a: jnp.asarray(a, jnp.float32)

    def pad_gate_rows(w):                      # [4H, K] -> [4*HP, K]
        K = w.shape[1]
        out = jnp.zeros((4 * HP, K), jnp.float32)
        for g in range(4):
            out = out.at[g * HP:g * HP + H].set(w[g * H:(g + 1) * H])
        return out

    def pad_cols(w):                           # [*, H] -> [*, HP]
        return jnp.pad(w, ((0, 0), (0, HP - w.shape[1])))

    w_ih1 = pad_gate_rows(f32(params["w_ih1"]))                              # [4HP, 1]
    w_hh1 = pad_gate_rows(pad_cols(f32(params["w_hh1"])))                    # [4HP, HP]
    b1 = pad_gate_rows((f32(params["b_ih1"]) + f32(params["b_hh1"]))[:, None])
    w_ih2 = pad_gate_rows(pad_cols(f32(params["w_ih2"])))                    # [4HP, HP]
    w_hh2 = pad_gate_rows(pad_cols(f32(params["w_hh2"])))                    # [4HP, HP]
    b2 = pad_gate_rows((f32(params["b_ih2"]) + f32(params["b_hh2"]))[:, None])
    w_out = pad_cols(f32(params["w_out"])).T                                 # [HP, 1]
    b_out = f32(params["b_out"]).reshape(1, 1)                               # [1, 1]
    return (w_ih1, w_hh1, b1, w_ih2, w_hh2, b2, w_out, b_out)


# --------------------------------------------------------------------------- #
# State packing (done ONCE; the packed state is carried across forward calls)
# --------------------------------------------------------------------------- #
def pack_state(hidden, cell, *, block_n=None, hpad=HPAD):
    """(hidden, cell) tuples of [N, H] -> 4 packed [HPAD, Npad] slabs.

    Call once; thereafter feed the returned state straight back into
    optimizer_forward (use the same block_n).  Pad rows/lanes are zero and the
    kernel preserves that invariant.
    """
    h0, h1 = hidden
    c0, c1 = cell
    n, h = h0.shape
    _, npad = _choose_tiling(n, block_n)

    def pk(s):
        return (jnp.zeros((hpad, npad), jnp.float32)
                .at[:h, :n].set(jnp.asarray(s, jnp.float32).T))

    return (pk(h0), pk(c0), pk(h1), pk(c1))


def unpack_state(state, n, hidden_sz=HIDDEN_SZ):
    """Packed state -> (hidden, cell) tuples of [N, H] (for inspection only)."""
    h0p, c0p, h1p, c1p = state
    up = lambda s: s[:hidden_sz, :n].T
    return (up(h0p), up(h1p)), (up(c0p), up(c1p))


# --------------------------------------------------------------------------- #
# Forward wrapper
# --------------------------------------------------------------------------- #
def _packed_pallas_call(x_t, h0, c0, h1, c1, packed, bn):
    hp, npad = h0.shape
    grid = (npad // bn,)

    state_spec = pl.BlockSpec((hp, bn), lambda i: (0, i))
    row_spec = pl.BlockSpec((1, bn), lambda i: (0, i))
    const_spec = lambda a: pl.BlockSpec(a.shape, lambda i: (0, 0))

    out_shapes = (
        jax.ShapeDtypeStruct((1, npad), jnp.float32),
        jax.ShapeDtypeStruct((hp, npad), h0.dtype),
        jax.ShapeDtypeStruct((hp, npad), c0.dtype),
        jax.ShapeDtypeStruct((hp, npad), h1.dtype),
        jax.ShapeDtypeStruct((hp, npad), c1.dtype),
    )

    return pl.pallas_call(
        optimizer_kernel,
        out_shape=out_shapes,
        grid=grid,
        in_specs=[row_spec, state_spec, state_spec, state_spec, state_spec]
                 + [const_spec(w) for w in packed],
        out_specs=[row_spec, state_spec, state_spec, state_spec, state_spec],
        # Update optimizer state in place: the packed h0,c0,h1,c1 inputs alias
        # the corresponding state outputs.
        input_output_aliases={1: 1, 2: 2, 3: 3, 4: 4},
        compiler_params=pltpu.CompilerParams(
            dimension_semantics=("parallel",),
            vmem_limit_bytes=64 * 1024 * 1024),
    )(x_t, h0, c0, h1, c1, *packed)


@functools.partial(jax.jit, static_argnames=("bn",), donate_argnums=(1, 2, 3, 4))
def _forward_jit(inp, h0p, c0p, h1p, c1p, packed, *, bn):
    n = inp.shape[0]
    npad = h0p.shape[1]

    # Only the [N,1] gradient is reshaped per call; states stay packed.
    x_t = jnp.zeros((1, npad), jnp.float32).at[0, :n].set(
        jnp.asarray(inp, jnp.float32)[:, 0])

    out_p, h0o, c0o, h1o, c1o = _packed_pallas_call(
        x_t, h0p, c0p, h1p, c1p, packed, bn)

    out = out_p[0, :n][:, None]
    return out, (h0o, c0o, h1o, c1o)


def optimizer_forward(inp, state, packed, *, block_n=None):
    """Mirrors Optimizer.forward(inp, hidden, cell) with preproc=False.

    inp:    [N, 1] gradients.
    state:  packed state from pack_state() (or a previous call); it is donated
            and updated in place — always thread the returned state forward.
    packed: weights from pack_params().
    Returns (output [N, 1], new packed state).
    """
    n = inp.shape[0]
    bn, npad = _choose_tiling(n, block_n)
    assert state[0].shape == (HPAD, npad), (
        "packed state shape mismatch: pack_state and optimizer_forward must "
        "use the same block_n")
    return _forward_jit(inp, *state, packed, bn=bn)


# --------------------------------------------------------------------------- #
# Pure-JAX reference (PyTorch semantics) and deterministic init
# --------------------------------------------------------------------------- #
def _reference_forward(inp, hidden, cell, params):
    H = HIDDEN_SZ

    def lstm_cell(x, h, c, w_ih, w_hh, b_ih, b_hh):
        gates = x @ w_ih.T + b_ih + h @ w_hh.T + b_hh
        i = jax.nn.sigmoid(gates[:, 0 * H:1 * H])
        f = jax.nn.sigmoid(gates[:, 1 * H:2 * H])
        g = jnp.tanh(gates[:, 2 * H:3 * H])
        o = jax.nn.sigmoid(gates[:, 3 * H:4 * H])
        c_new = f * c + i * g
        h_new = o * jnp.tanh(c_new)
        return h_new, c_new

    h0, c0 = lstm_cell(inp, hidden[0], cell[0],
                       params["w_ih1"], params["w_hh1"],
                       params["b_ih1"], params["b_hh1"])
    h1, c1 = lstm_cell(h0, hidden[1], cell[1],
                       params["w_ih2"], params["w_hh2"],
                       params["b_ih2"], params["b_hh2"])
    out = h1 @ params["w_out"].T + params["b_out"]
    return out, (h0, h1), (c0, c1)


def _init_params(key, hidden_sz=HIDDEN_SZ, in_sz=1):
    """Deterministic init mimicking PyTorch's uniform(-1/sqrt(H), 1/sqrt(H))."""
    H = hidden_sz
    bound = 1.0 / jnp.sqrt(jnp.float32(H))
    keys = jax.random.split(key, 10)

    def u(k, shape):
        return jax.random.uniform(k, shape, jnp.float32, -bound, bound)

    return {
        "w_ih1": u(keys[0], (4 * H, in_sz)),
        "w_hh1": u(keys[1], (4 * H, H)),
        "b_ih1": u(keys[2], (4 * H,)),
        "b_hh1": u(keys[3], (4 * H,)),
        "w_ih2": u(keys[4], (4 * H, H)),
        "w_hh2": u(keys[5], (4 * H, H)),
        "b_ih2": u(keys[6], (4 * H,)),
        "b_hh2": u(keys[7], (4 * H,)),
        "w_out": u(keys[8], (1, H)),
        "b_out": u(keys[9], (1,)),
    }


if __name__ == "__main__":
    key = jax.random.PRNGKey(0)
    k_p, k_x1, k_x2, k_h0, k_c0, k_h1, k_c1 = jax.random.split(key, 7)

    N = 300        # batch of parameters being optimized (not a multiple of 128)
    H = HIDDEN_SZ  # 20, from the module's __init__

    params = _init_params(k_p)
    packed = pack_params(params)   # done once, not per forward call

    inp1 = jax.random.normal(k_x1, (N, 1), jnp.float32)
    inp2 = jax.random.normal(k_x2, (N, 1), jnp.float32)
    hidden = (jax.random.normal(k_h0, (N, H), jnp.float32),
              jax.random.normal(k_h1, (N, H), jnp.float32))
    cell = (jax.random.normal(k_c0, (N, H), jnp.float32),
            jax.random.normal(k_c1, (N, H), jnp.float32))

    # Pack the optimizer state ONCE; it stays in the lane-major packed layout
    # across forward calls (default tiling -> 2 grid tiles at N=300, which also
    # exercises batch padding and multi-tile pipelining).
    state = pack_state(hidden, cell)

    # Two chained steps through the Pallas kernel (state never unpacked between).
    out1, state = optimizer_forward(inp1, state, packed)
    out2, state = optimizer_forward(inp2, state, packed)
    jax.block_until_ready((out1, out2, state))

    # Correctness check against a pure-JAX reference of the PyTorch semantics.
    ro1, rhid, rcell = _reference_forward(inp1, hidden, cell, params)
    ro2, rhid, rcell = _reference_forward(inp2, rhid, rcell, params)
    (h0n, h1n), (c0n, c1n) = unpack_state(state, N)

    checks = [(out1, ro1), (out2, ro2),
              (h0n, rhid[0]), (h1n, rhid[1]),
              (c0n, rcell[0]), (c1n, rcell[1])]
    for got, want in checks:
        assert jnp.allclose(got, want, atol=1e-5, rtol=1e-5), "mismatch vs reference"

    print("KERNEL_OK")
</pallas_src>

<mosaic_0001>
module attributes {stable_mosaic.version = 11 : i64} {
  func.func @optimizer_kernel(%arg0: i32, %arg1: memref<1x256xf32, #tpu.memory_space<vmem>>, %arg2: memref<24x256xf32, #tpu.memory_space<vmem>>, %arg3: memref<24x256xf32, #tpu.memory_space<vmem>>, %arg4: memref<24x256xf32, #tpu.memory_space<vmem>>, %arg5: memref<24x256xf32, #tpu.memory_space<vmem>>, %arg6: memref<96x1xf32, #tpu.memory_space<vmem>>, %arg7: memref<96x24xf32, #tpu.memory_space<vmem>>, %arg8: memref<96x1xf32, #tpu.memory_space<vmem>>, %arg9: memref<96x24xf32, #tpu.memory_space<vmem>>, %arg10: memref<96x24xf32, #tpu.memory_space<vmem>>, %arg11: memref<96x1xf32, #tpu.memory_space<vmem>>, %arg12: memref<24x1xf32, #tpu.memory_space<vmem>>, %arg13: memref<1x1xf32, #tpu.memory_space<vmem>>, %arg14: memref<1x256xf32, #tpu.memory_space<vmem>>, %arg15: memref<24x256xf32, #tpu.memory_space<vmem>>, %arg16: memref<24x256xf32, #tpu.memory_space<vmem>>, %arg17: memref<24x256xf32, #tpu.memory_space<vmem>>, %arg18: memref<24x256xf32, #tpu.memory_space<vmem>>) attributes {dimension_semantics = [#tpu.dimension_semantics<parallel>], iteration_bounds = array<i64: 2>, scalar_prefetch = 0 : i64, scratch_operands = 0 : i64, tpu.core_type = #tpu.core_type<tc>, window_params = [{transform_indices = @transform_0, window_bounds = array<i64: 1, 256>}, {transform_indices = @transform_1, window_bounds = array<i64: 24, 256>}, {transform_indices = @transform_2, window_bounds = array<i64: 24, 256>}, {transform_indices = @transform_3, window_bounds = array<i64: 24, 256>}, {transform_indices = @transform_4, window_bounds = array<i64: 24, 256>}, {pipeline_mode = #tpu.pipeline_mode<synchronous>, transform_indices = @transform_5, window_bounds = array<i64: 96, 1>}, {pipeline_mode = #tpu.pipeline_mode<synchronous>, transform_indices = @transform_6, window_bounds = array<i64: 96, 24>}, {pipeline_mode = #tpu.pipeline_mode<synchronous>, transform_indices = @transform_7, window_bounds = array<i64: 96, 1>}, {pipeline_mode = #tpu.pipeline_mode<synchronous>, transform_indices = @transform_8, window_bounds = array<i64: 96, 24>}, {pipeline_mode = #tpu.pipeline_mode<synchronous>, transform_indices = @transform_9, window_bounds = array<i64: 96, 24>}, {pipeline_mode = #tpu.pipeline_mode<synchronous>, transform_indices = @transform_10, window_bounds = array<i64: 96, 1>}, {pipeline_mode = #tpu.pipeline_mode<synchronous>, transform_indices = @transform_11, window_bounds = array<i64: 24, 1>}, {pipeline_mode = #tpu.pipeline_mode<synchronous>, transform_indices = @transform_12, window_bounds = array<i64: 1, 1>}, {transform_indices = @transform_13, window_bounds = array<i64: 1, 256>}, {transform_indices = @transform_14, window_bounds = array<i64: 24, 256>}, {transform_indices = @transform_15, window_bounds = array<i64: 24, 256>}, {transform_indices = @transform_16, window_bounds = array<i64: 24, 256>}, {transform_indices = @transform_17, window_bounds = array<i64: 24, 256>}]} {
    %c0 = arith.constant 0 : index
    %c0_0 = arith.constant 0 : index
    %0 = vector.load %arg1[%c0, %c0_0] : memref<1x256xf32, #tpu.memory_space<vmem>>, vector<1x256xf32>
    %c0_1 = arith.constant 0 : index
    %c0_2 = arith.constant 0 : index
    %1 = vector.load %arg2[%c0_1, %c0_2] : memref<24x256xf32, #tpu.memory_space<vmem>>, vector<24x256xf32>
    %c0_3 = arith.constant 0 : index
    %c0_4 = arith.constant 0 : index
    %2 = vector.load %arg3[%c0_3, %c0_4] : memref<24x256xf32, #tpu.memory_space<vmem>>, vector<24x256xf32>
    %c0_5 = arith.constant 0 : index
    %c0_6 = arith.constant 0 : index
    %3 = vector.load %arg4[%c0_5, %c0_6] : memref<24x256xf32, #tpu.memory_space<vmem>>, vector<24x256xf32>
    %c0_7 = arith.constant 0 : index
    %c0_8 = arith.constant 0 : index
    %4 = vector.load %arg5[%c0_7, %c0_8] : memref<24x256xf32, #tpu.memory_space<vmem>>, vector<24x256xf32>
    %c0_9 = arith.constant 0 : index
    %c0_10 = arith.constant 0 : index
    %5 = vector.load %arg10[%c0_9, %c0_10] : memref<96x24xf32, #tpu.memory_space<vmem>>, vector<96x24xf32>
    %cst = arith.constant dense<0.000000e+00> : vector<96x256xf32>
    %6 = tpu.matmul %5, %3, %cst {dimension_numbers = #tpu.dot_dimension_numbers<[1], [0], [0], [1], [0, 0, 1, 1], [], []>} : vector<96x24xf32>, vector<24x256xf32>, vector<96x256xf32> -> vector<96x256xf32>
    %c0_11 = arith.constant 0 : index
    %c0_12 = arith.constant 0 : index
    %7 = vector.load %arg6[%c0_11, %c0_12] : memref<96x1xf32, #tpu.memory_space<vmem>>, vector<96x1xf32>
    %8 = vector.broadcast %7 : vector<96x1xf32> to vector<96x256xf32>
    %9 = vector.broadcast %0 : vector<1x256xf32> to vector<96x256xf32>
    %10 = arith.mulf %8, %9 : vector<96x256xf32>
    %c0_13 = arith.constant 0 : index
    %c0_14 = arith.constant 0 : index
    %11 = vector.load %arg7[%c0_13, %c0_14] : memref<96x24xf32, #tpu.memory_space<vmem>>, vector<96x24xf32>
    %cst_15 = arith.constant dense<0.000000e+00> : vector<96x256xf32>
    %12 = tpu.matmul %11, %1, %cst_15 {dimension_numbers = #tpu.dot_dimension_numbers<[1], [0], [0], [1], [0, 0, 1, 1], [], []>} : vector<96x24xf32>, vector<24x256xf32>, vector<96x256xf32> -> vector<96x256xf32>
    %13 = arith.addf %10, %12 : vector<96x256xf32>
    %c0_16 = arith.constant 0 : index
    %c0_17 = arith.constant 0 : index
    %14 = vector.load %arg8[%c0_16, %c0_17] : memref<96x1xf32, #tpu.memory_space<vmem>>, vector<96x1xf32>
    %15 = vector.broadcast %14 : vector<96x1xf32> to vector<96x256xf32>
    %16 = arith.addf %13, %15 : vector<96x256xf32>
    %17 = vector.extract_strided_slice %16 {offsets = [0, 0], sizes = [24, 256], strides = [1, 1]} : vector<96x256xf32> to vector<24x256xf32>
    %cst_18 = arith.constant 5.000000e-01 : f32
    %18 = vector.broadcast %cst_18 : f32 to vector<24x256xf32>
    %19 = arith.mulf %18, %17 : vector<24x256xf32>
    %20 = math.tanh %19 : vector<24x256xf32>
    %cst_19 = arith.constant 1.000000e+00 : f32
    %21 = vector.broadcast %cst_19 : f32 to vector<24x256xf32>
    %22 = arith.addf %20, %21 : vector<24x256xf32>
    %cst_20 = arith.constant 5.000000e-01 : f32
    %23 = vector.broadcast %cst_20 : f32 to vector<24x256xf32>
    %24 = arith.mulf %23, %22 : vector<24x256xf32>
    %25 = vector.extract_strided_slice %16 {offsets = [24, 0], sizes = [24, 256], strides = [1, 1]} : vector<96x256xf32> to vector<24x256xf32>
    %cst_21 = arith.constant 5.000000e-01 : f32
    %26 = vector.broadcast %cst_21 : f32 to vector<24x256xf32>
    %27 = arith.mulf %26, %25 : vector<24x256xf32>
    %28 = math.tanh %27 : vector<24x256xf32>
    %cst_22 = arith.constant 1.000000e+00 : f32
    %29 = vector.broadcast %cst_22 : f32 to vector<24x256xf32>
    %30 = arith.addf %28, %29 : vector<24x256xf32>
    %cst_23 = arith.constant 5.000000e-01 : f32
    %31 = vector.broadcast %cst_23 : f32 to vector<24x256xf32>
    %32 = arith.mulf %31, %30 : vector<24x256xf32>
    %33 = vector.extract_strided_slice %16 {offsets = [48, 0], sizes = [24, 256], strides = [1, 1]} : vector<96x256xf32> to vector<24x256xf32>
    %34 = math.tanh %33 : vector<24x256xf32>
    %35 = vector.extract_strided_slice %16 {offsets = [72, 0], sizes = [24, 256], strides = [1, 1]} : vector<96x256xf32> to vector<24x256xf32>
    %cst_24 = arith.constant 5.000000e-01 : f32
    %36 = vector.broadcast %cst_24 : f32 to vector<24x256xf32>
    %37 = arith.mulf %36, %35 : vector<24x256xf32>
    %38 = math.tanh %37 : vector<24x256xf32>
    %cst_25 = arith.constant 1.000000e+00 : f32
    %39 = vector.broadcast %cst_25 : f32 to vector<24x256xf32>
    %40 = arith.addf %38, %39 : vector<24x256xf32>
    %cst_26 = arith.constant 5.000000e-01 : f32
    %41 = vector.broadcast %cst_26 : f32 to vector<24x256xf32>
    %42 = arith.mulf %41, %40 : vector<24x256xf32>
    %43 = arith.mulf %32, %2 : vector<24x256xf32>
    %44 = arith.mulf %24, %34 : vector<24x256xf32>
    %45 = arith.addf %43, %44 : vector<24x256xf32>
    %46 = math.tanh %45 : vector<24x256xf32>
    %47 = arith.mulf %42, %46 : vector<24x256xf32>
    %c0_27 = arith.constant 0 : index
    %c0_28 = arith.constant 0 : index
    %48 = vector.load %arg9[%c0_27, %c0_28] : memref<96x24xf32, #tpu.memory_space<vmem>>, vector<96x24xf32>
    %cst_29 = arith.constant dense<0.000000e+00> : vector<96x256xf32>
    %49 = tpu.matmul %48, %47, %cst_29 {dimension_numbers = #tpu.dot_dimension_numbers<[1], [0], [0], [1], [0, 0, 1, 1], [], []>} : vector<96x24xf32>, vector<24x256xf32>, vector<96x256xf32> -> vector<96x256xf32>
    %50 = arith.addf %49, %6 : vector<96x256xf32>
    %c0_30 = arith.constant 0 : index
    %c0_31 = arith.constant 0 : index
    %51 = vector.load %arg11[%c0_30, %c0_31] : memref<96x1xf32, #tpu.memory_space<vmem>>, vector<96x1xf32>
    %52 = vector.broadcast %51 : vector<96x1xf32> to vector<96x256xf32>
    %53 = arith.addf %50, %52 : vector<96x256xf32>
    %54 = vector.extract_strided_slice %53 {offsets = [0, 0], sizes = [24, 256], strides = [1, 1]} : vector<96x256xf32> to vector<24x256xf32>
    %cst_32 = arith.constant 5.000000e-01 : f32
    %55 = vector.broadcast %cst_32 : f32 to vector<24x256xf32>
    %56 = arith.mulf %55, %54 : vector<24x256xf32>
    %57 = math.tanh %56 : vector<24x256xf32>
    %cst_33 = arith.constant 1.000000e+00 : f32
    %58 = vector.broadcast %cst_33 : f32 to vector<24x256xf32>
    %59 = arith.addf %57, %58 : vector<24x256xf32>
    %cst_34 = arith.constant 5.000000e-01 : f32
    %60 = vector.broadcast %cst_34 : f32 to vector<24x256xf32>
    %61 = arith.mulf %60, %59 : vector<24x256xf32>
    %62 = vector.extract_strided_slice %53 {offsets = [24, 0], sizes = [24, 256], strides = [1, 1]} : vector<96x256xf32> to vector<24x256xf32>
    %cst_35 = arith.constant 5.000000e-01 : f32
    %63 = vector.broadcast %cst_35 : f32 to vector<24x256xf32>
    %64 = arith.mulf %63, %62 : vector<24x256xf32>
    %65 = math.tanh %64 : vector<24x256xf32>
    %cst_36 = arith.constant 1.000000e+00 : f32
    %66 = vector.broadcast %cst_36 : f32 to vector<24x256xf32>
    %67 = arith.addf %65, %66 : vector<24x256xf32>
    %cst_37 = arith.constant 5.000000e-01 : f32
    %68 = vector.broadcast %cst_37 : f32 to vector<24x256xf32>
    %69 = arith.mulf %68, %67 : vector<24x256xf32>
    %70 = vector.extract_strided_slice %53 {offsets = [48, 0], sizes = [24, 256], strides = [1, 1]} : vector<96x256xf32> to vector<24x256xf32>
    %71 = math.tanh %70 : vector<24x256xf32>
    %72 = vector.extract_strided_slice %53 {offsets = [72, 0], sizes = [24, 256], strides = [1, 1]} : vector<96x256xf32> to vector<24x256xf32>
    %cst_38 = arith.constant 5.000000e-01 : f32
    %73 = vector.broadcast %cst_38 : f32 to vector<24x256xf32>
    %74 = arith.mulf %73, %72 : vector<24x256xf32>
    %75 = math.tanh %74 : vector<24x256xf32>
    %cst_39 = arith.constant 1.000000e+00 : f32
    %76 = vector.broadcast %cst_39 : f32 to vector<24x256xf32>
    %77 = arith.addf %75, %76 : vector<24x256xf32>
    %cst_40 = arith.constant 5.000000e-01 : f32
    %78 = vector.broadcast %cst_40 : f32 to vector<24x256xf32>
    %79 = arith.mulf %78, %77 : vector<24x256xf32>
    %80 = arith.mulf %69, %4 : vector<24x256xf32>
    %81 = arith.mulf %61, %71 : vector<24x256xf32>
    %82 = arith.addf %80, %81 : vector<24x256xf32>
    %83 = math.tanh %82 : vector<24x256xf32>
    %84 = arith.mulf %79, %83 : vector<24x256xf32>
    %c0_41 = arith.constant 0 : index
    %c0_42 = arith.constant 0 : index
    %85 = vector.load %arg12[%c0_41, %c0_42] : memref<24x1xf32, #tpu.memory_space<vmem>>, vector<24x1xf32>
    %86 = vector.broadcast %85 : vector<24x1xf32> to vector<24x256xf32>
    %87 = arith.mulf %86, %84 : vector<24x256xf32>
    %cst_43 = arith.constant dense<0.000000e+00> : vector<256xf32>
    %88 = vector.multi_reduction <add>, %87, %cst_43 [0] : vector<24x256xf32> to vector<256xf32>
    %89 = vector.shape_cast %88 : vector<256xf32> to vector<1x256xf32>
    %c0_44 = arith.constant 0 : index
    %c0_45 = arith.constant 0 : index
    %90 = vector.load %arg13[%c0_44, %c0_45] : memref<1x1xf32, #tpu.memory_space<vmem>>, vector<1x1xf32>
    %91 = vector.broadcast %90 : vector<1x1xf32> to vector<1x256xf32>
    %92 = arith.addf %89, %91 : vector<1x256xf32>
    %c0_46 = arith.constant 0 : index
    %c0_47 = arith.constant 0 : index
    %93 = vector.load %arg14[%c0_46, %c0_47] : memref<1x256xf32, #tpu.memory_space<vmem>>, vector<1x256xf32>
    tpu.vector_store %arg14[%c0_46, %c0_47], %92 {strides = array<i32>} : memref<1x256xf32, #tpu.memory_space<vmem>>, vector<1x256xf32>,
    %c0_48 = arith.constant 0 : index
    %c0_49 = arith.constant 0 : index
    %94 = vector.load %arg15[%c0_48, %c0_49] : memref<24x256xf32, #tpu.memory_space<vmem>>, vector<24x256xf32>
    tpu.vector_store %arg15[%c0_48, %c0_49], %47 {strides = array<i32>} : memref<24x256xf32, #tpu.memory_space<vmem>>, vector<24x256xf32>,
    %c0_50 = arith.constant 0 : index
    %c0_51 = arith.constant 0 : index
    %95 = vector.load %arg16[%c0_50, %c0_51] : memref<24x256xf32, #tpu.memory_space<vmem>>, vector<24x256xf32>
    tpu.vector_store %arg16[%c0_50, %c0_51], %45 {strides = array<i32>} : memref<24x256xf32, #tpu.memory_space<vmem>>, vector<24x256xf32>,
    %c0_52 = arith.constant 0 : index
    %c0_53 = arith.constant 0 : index
    %96 = vector.load %arg17[%c0_52, %c0_53] : memref<24x256xf32, #tpu.memory_space<vmem>>, vector<24x256xf32>
    tpu.vector_store %arg17[%c0_52, %c0_53], %84 {strides = array<i32>} : memref<24x256xf32, #tpu.memory_space<vmem>>, vector<24x256xf32>,
    %c0_54 = arith.constant 0 : index
    %c0_55 = arith.constant 0 : index
    %97 = vector.load %arg18[%c0_54, %c0_55] : memref<24x256xf32, #tpu.memory_space<vmem>>, vector<24x256xf32>
    tpu.vector_store %arg18[%c0_54, %c0_55], %82 {strides = array<i32>} : memref<24x256xf32, #tpu.memory_space<vmem>>, vector<24x256xf32>,
    return
  }
  func.func @transform_0(%arg0: i32) -> (i32, i32) {
    %c0_i32 = arith.constant 0 : i32
    %c0_i32_0 = arith.constant 0 : i32
    return %c0_i32, %arg0 : i32, i32
  }
  func.func @transform_1(%arg0: i32) -> (i32, i32) {
    %c0_i32 = arith.constant 0 : i32
    %c0_i32_0 = arith.constant 0 : i32
    return %c0_i32, %arg0 : i32, i32
  }
  func.func @transform_2(%arg0: i32) -> (i32, i32) {
    %c0_i32 = arith.constant 0 : i32
    %c0_i32_0 = arith.constant 0 : i32
    return %c0_i32, %arg0 : i32, i32
  }
  func.func @transform_3(%arg0: i32) -> (i32, i32) {
    %c0_i32 = arith.constant 0 : i32
    %c0_i32_0 = arith.constant 0 : i32
    return %c0_i32, %arg0 : i32, i32
  }
  func.func @transform_4(%arg0: i32) -> (i32, i32) {
    %c0_i32 = arith.constant 0 : i32
    %c0_i32_0 = arith.constant 0 : i32
    return %c0_i32, %arg0 : i32, i32
  }
  func.func @transform_5(%arg0: i32) -> (i32, i32) {
    %c0_i32 = arith.constant 0 : i32
    %c0_i32_0 = arith.constant 0 : i32
    %c0_i32_1 = arith.constant 0 : i32
    return %c0_i32, %c0_i32_0 : i32, i32
  }
  func.func @transform_6(%arg0: i32) -> (i32, i32) {
    %c0_i32 = arith.constant 0 : i32
    %c0_i32_0 = arith.constant 0 : i32
    %c0_i32_1 = arith.constant 0 : i32
    return %c0_i32, %c0_i32_0 : i32, i32
  }
  func.func @transform_7(%arg0: i32) -> (i32, i32) {
    %c0_i32 = arith.constant 0 : i32
    %c0_i32_0 = arith.constant 0 : i32
    %c0_i32_1 = arith.constant 0 : i32
    return %c0_i32, %c0_i32_0 : i32, i32
  }
  func.func @transform_8(%arg0: i32) -> (i32, i32) {
    %c0_i32 = arith.constant 0 : i32
    %c0_i32_0 = arith.constant 0 : i32
    %c0_i32_1 = arith.constant 0 : i32
    return %c0_i32, %c0_i32_0 : i32, i32
  }
  func.func @transform_9(%arg0: i32) -> (i32, i32) {
    %c0_i32 = arith.constant 0 : i32
    %c0_i32_0 = arith.constant 0 : i32
    %c0_i32_1 = arith.constant 0 : i32
    return %c0_i32, %c0_i32_0 : i32, i32
  }
  func.func @transform_10(%arg0: i32) -> (i32, i32) {
    %c0_i32 = arith.constant 0 : i32
    %c0_i32_0 = arith.constant 0 : i32
    %c0_i32_1 = arith.constant 0 : i32
    return %c0_i32, %c0_i32_0 : i32, i32
  }
  func.func @transform_11(%arg0: i32) -> (i32, i32) {
    %c0_i32 = arith.constant 0 : i32
    %c0_i32_0 = arith.constant 0 : i32
    %c0_i32_1 = arith.constant 0 : i32
    return %c0_i32, %c0_i32_0 : i32, i32
  }
  func.func @transform_12(%arg0: i32) -> (i32, i32) {
    %c0_i32 = arith.constant 0 : i32
    %c0_i32_0 = arith.constant 0 : i32
    %c0_i32_1 = arith.constant 0 : i32
    return %c0_i32, %c0_i32_0 : i32, i32
  }
  func.func @transform_13(%arg0: i32) -> (i32, i32) {
    %c0_i32 = arith.constant 0 : i32
    %c0_i32_0 = arith.constant 0 : i32
    return %c0_i32, %arg0 : i32, i32
  }
  func.func @transform_14(%arg0: i32) -> (i32, i32) {
    %c0_i32 = arith.constant 0 : i32
    %c0_i32_0 = arith.constant 0 : i32
    return %c0_i32, %arg0 : i32, i32
  }
  func.func @transform_15(%arg0: i32) -> (i32, i32) {
    %c0_i32 = arith.constant 0 : i32
    %c0_i32_0 = arith.constant 0 : i32
    return %c0_i32, %arg0 : i32, i32
  }
  func.func @transform_16(%arg0: i32) -> (i32, i32) {
    %c0_i32 = arith.constant 0 : i32
    %c0_i32_0 = arith.constant 0 : i32
    return %c0_i32, %arg0 : i32, i32
  }
  func.func @transform_17(%arg0: i32) -> (i32, i32) {
    %c0_i32 = arith.constant 0 : i32
    %c0_i32_0 = arith.constant 0 : i32
    return %c0_i32, %arg0 : i32, i32
  }
}

</mosaic_0001>

<llo_original>
// kernel: _forward_jit.1
$region0: #{_forward_jit.1}
  #allocation0 [shape = 'u32[]', space=smem, size = 0x4, offset = 0x4, fixed_abs, tag = 'smem constant byte address 0x4 - core index']
  #allocation1 [shape = 'u32[144,128]{1,0:T(1,128)}', space=vmem, size = 0x12000, scoped, tag = 'internal scratch']
  #allocation2 [shape = 'f32[1,1]{1,0:T(1,128)S(1)}', space=vmem, size = 0x200, scoped, tag = 'scoped memory for _forward_jit.1']
  %s0 = inlined_call_operand.vmem [shape: f32[1,512], index: 0, kind: input, shape index: {}]
  %s1 = inlined_call_operand.vmem [shape: f32[24,512], index: 1, kind: input, shape index: {}, may-alias: {1,14}]
  %s2 = inlined_call_operand.vmem [shape: f32[24,512], index: 2, kind: input, shape index: {}, may-alias: {2,15}]
  %s3 = inlined_call_operand.vmem [shape: f32[24,512], index: 3, kind: input, shape index: {}, may-alias: {3,16}]
  %s4 = inlined_call_operand.vmem [shape: f32[24,512], index: 4, kind: input, shape index: {}, may-alias: {4,17}]
  %s5 = inlined_call_operand.vmem [shape: f32[96,1], index: 5, kind: input, shape index: {}]
  %s6 = inlined_call_operand.vmem [shape: f32[96,24], index: 6, kind: input, shape index: {}]
  %s7 = inlined_call_operand.vmem [shape: f32[96,1], index: 7, kind: input, shape index: {}]
  %s8 = inlined_call_operand.vmem [shape: f32[96,24], index: 8, kind: input, shape index: {}]
  %s9 = inlined_call_operand.vmem [shape: f32[96,24], index: 9, kind: input, shape index: {}]
  %s10 = inlined_call_operand.vmem [shape: f32[96,1], index: 10, kind: input, shape index: {}]
  %s11 = inlined_call_operand.vmem [shape: f32[24,1], index: 11, kind: input, shape index: {}]
  %s12 = inlined_call_operand.<no memory space> [shape: f32[1,1], index: 12, kind: input, shape index: {}]
  %s13 = inlined_call_operand.vmem [shape: f32[1,512], index: 13, kind: output, shape index: {0}]
  %s14 = inlined_call_operand.vmem [shape: f32[24,512], index: 14, kind: output, shape index: {1}, may-alias: {1,14}]
  %s15 = inlined_call_operand.vmem [shape: f32[24,512], index: 15, kind: output, shape index: {2}, may-alias: {2,15}]
  %s16 = inlined_call_operand.vmem [shape: f32[24,512], index: 16, kind: output, shape index: {3}, may-alias: {3,16}]
  %s17 = inlined_call_operand.vmem [shape: f32[24,512], index: 17, kind: output, shape index: {4}, may-alias: {4,17}]
  %18 = xla_tuple %s13, %s14, %s15, %s16, %s17
  %s19 = sld [smem:[#allocation0]]
  $region285: #{_forward_jit.1} parent=0
    _
  %s21 = ssub.s32 1, %s19
  %s22 = scalar_select 0, %s21, %s19
  %v23 = vstv %s12
  %24 = vst [vmem:[#allocation2] sm:$0x1] %v23
  $region1: #{_forward_jit.1} parent=0
    #allocation3 [shape = 'u8[49152]{0}', space=vmem, size = 0xc000, scoped, tag = 'input window, operand 1']
    #allocation4 [shape = 'u8[49152]{0}', space=vmem, size = 0xc000, scoped, tag = 'input window, operand 2']
    #allocation5 [shape = 'u8[49152]{0}', space=vmem, size = 0xc000, scoped, tag = 'input window, operand 3']
    #allocation6 [shape = 'u8[49152]{0}', space=vmem, size = 0xc000, scoped, tag = 'input window, operand 4']
    #allocation7 [shape = 'u8[49152]{0}', space=vmem, size = 0xc000, scoped, tag = 'output window, operand 1']
    #allocation8 [shape = 'u8[49152]{0}', space=vmem, size = 0xc000, scoped, tag = 'output window, operand 2']
    #allocation9 [shape = 'u8[49152]{0}', space=vmem, size = 0xc000, scoped, tag = 'output window, operand 3']
    #allocation10 [shape = 'u8[49152]{0}', space=vmem, size = 0xc000, scoped, tag = 'output window, operand 4']
    loop: start=0, step=1, limit=4
    $region2: #{_forward_jit.1} parent=1 // loop_pre_header
      _
    $region3: #{_forward_jit.1} parent=1 // loop_header
      %s26 = sphi 0, %s30
      %p27 = scmp.ge.s32.totalorder %s26, 4
      %s36 = sphi 0, %s38
      %s39 = sphi 0, %s36
      %s40 = sphi 0, %s39
      %s56 = sphi 0, %s40
      %s62 = sphi 0, %s64
      %s65 = sphi 0, %s62
      %s66 = sphi 0, %s65
      %s82 = sphi 0, %s66
      %s88 = sphi 0, %s90
      %s91 = sphi 0, %s88
      %s92 = sphi 0, %s91
      %s108 = sphi 0, %s92
      %s114 = sphi 0, %s116
      %s117 = sphi 0, %s114
      %s118 = sphi 0, %s117
      %s134 = sphi 0, %s118
      %s140 = sphi 0, %s142
      %s143 = sphi 0, %s140
      %s144 = sphi 0, %s143
      %s160 = sphi 0, %s144
      %s164 = sphi 0, %s164
      %s166 = sphi 0, %s164
      %s167 = sphi 0, %s166
      %s181 = sphi 0, %s167
      %s185 = sphi 0, %s185
      %s187 = sphi 0, %s185
      %s188 = sphi 0, %s187
      %s202 = sphi 0, %s188
      %s206 = sphi 0, %s206
      %s208 = sphi 0, %s206
      %s209 = sphi 0, %s208
      %s223 = sphi 0, %s209
      %s227 = sphi 0, %s227
      %s229 = sphi 0, %s227
      %s230 = sphi 0, %s229
      %s244 = sphi 0, %s230
      %s248 = sphi 0, %s248
      %s250 = sphi 0, %s248
      %s251 = sphi 0, %s250
      %s265 = sphi 0, %s251
      %s269 = sphi 0, %s269
      %s271 = sphi 0, %s269
      %s272 = sphi 0, %s271
      %s286 = sphi 0, %s272
      %s290 = sphi 0, %s290
      %s292 = sphi 0, %s290
      %s293 = sphi 0, %s292
      %s307 = sphi 0, %s293
      %s311 = sphi 0, %s311
      %s313 = sphi 0, %s311
      %s314 = sphi 0, %s313
      %s328 = sphi 0, %s314
      %s334 = sphi 0, %s336
      %s337 = sphi 0, %s334
      %s338 = sphi 0, %s337
      %s354 = sphi 0, %s338
      %s360 = sphi 0, %s362
      %s363 = sphi 0, %s360
      %s364 = sphi 0, %s363
      %s380 = sphi 0, %s364
      %s386 = sphi 0, %s388
      %s389 = sphi 0, %s386
      %s390 = sphi 0, %s389
      %s406 = sphi 0, %s390
      %s412 = sphi 0, %s414
      %s415 = sphi 0, %s412
      %s416 = sphi 0, %s415
      %s432 = sphi 0, %s416
      %s438 = sphi 0, %s440
      %s441 = sphi 0, %s438
      %s442 = sphi 0, %s441
      %s458 = sphi 0, %s442
    $region4: #{_forward_jit.1} parent=1 // loop_header_branch
      %29 = sbr.rel (%p27) target = $region8
    $region5: #{_forward_jit.1} parent=1 // loop_body
      %s31 = ssub.s32 %s26, 1
      %s32 = ssub.s32 %s26, 2
      %s33 = sadd.s32 %s26, 1
      %s34 = ssub.s32 %s26, %s33
      %p35 = scmp.eq.s32.totalorder %s34, 0
      %s37 = sadd.s32 %s36, 1
      %s38 = scalar_select %p35, %s36, %s37
      %p41 = pneg %p35
      %p42 = scmp.eq.s32.totalorder %s26, 1
      %p43 = por %p41, %p42
      %p44 = scmp.ne.s32.totalorder %s36, %s39
      %p45 = scmp.eq.s32.totalorder %s26, 0
      %p46 = por %p44, %p45
      %p47 = scmp.ne.s32.totalorder %s36, %s39
      %p48 = scmp.eq.s32.totalorder %s31, 1
      %p49 = por %p47, %p48
      %p50 = scmp.ne.s32.totalorder %s39, %s40
      %p51 = scmp.eq.s32.totalorder %s31, 0
      %p52 = por %p50, %p51
      %p53 = scmp.ne.s32.totalorder %s39, %s40
      %p54 = scmp.eq.s32.totalorder %s32, 1
      %p55 = por %p53, %p54
      %p57 = scmp.ne.s32.totalorder %s40, %s56
      %p58 = scmp.eq.s32.totalorder %s32, 0
      %p59 = por %p57, %p58
      %s60 = ssub.s32 %s26, %s33
      %p61 = scmp.eq.s32.totalorder %s60, 0
      %s63 = sadd.s32 %s62, 1
      %s64 = scalar_select %p61, %s62, %s63
      %p67 = pneg %p61
      %p68 = scmp.eq.s32.totalorder %s26, 1
      %p69 = por %p67, %p68
      %p70 = scmp.ne.s32.totalorder %s62, %s65
      %p71 = scmp.eq.s32.totalorder %s26, 0
      %p72 = por %p70, %p71
      %p73 = scmp.ne.s32.totalorder %s62, %s65
      %p74 = scmp.eq.s32.totalorder %s31, 1
      %p75 = por %p73, %p74
      %p76 = scmp.ne.s32.totalorder %s65, %s66
      %p77 = scmp.eq.s32.totalorder %s31, 0
      %p78 = por %p76, %p77
      %p79 = scmp.ne.s32.totalorder %s65, %s66
      %p80 = scmp.eq.s32.totalorder %s32, 1
      %p81 = por %p79, %p80
      %p83 = scmp.ne.s32.totalorder %s66, %s82
      %p84 = scmp.eq.s32.totalorder %s32, 0
      %p85 = por %p83, %p84
      %s86 = ssub.s32 %s26, %s33
      %p87 = scmp.eq.s32.totalorder %s86, 0
      %s89 = sadd.s32 %s88, 1
      %s90 = scalar_select %p87, %s88, %s89
      %p93 = pneg %p87
      %p94 = scmp.eq.s32.totalorder %s26, 1
      %p95 = por %p93, %p94
      %p96 = scmp.ne.s32.totalorder %s88, %s91
      %p97 = scmp.eq.s32.totalorder %s26, 0
      %p98 = por %p96, %p97
      %p99 = scmp.ne.s32.totalorder %s88, %s91
      %p100 = scmp.eq.s32.totalorder %s31, 1
      %p101 = por %p99, %p100
      %p102 = scmp.ne.s32.totalorder %s91, %s92
      %p103 = scmp.eq.s32.totalorder %s31, 0
      %p104 = por %p102, %p103
      %p105 = scmp.ne.s32.totalorder %s91, %s92
      %p106 = scmp.eq.s32.totalorder %s32, 1
      %p107 = por %p105, %p106
      %p109 = scmp.ne.s32.totalorder %s92, %s108
      %p110 = scmp.eq.s32.totalorder %s32, 0
      %p111 = por %p109, %p110
      %s112 = ssub.s32 %s26, %s33
      %p113 = scmp.eq.s32.totalorder %s112, 0
      %s115 = sadd.s32 %s114, 1
      %s116 = scalar_select %p113, %s114, %s115
      %p119 = pneg %p113
      %p120 = scmp.eq.s32.totalorder %s26, 1
      %p121 = por %p119, %p120
      %p122 = scmp.ne.s32.totalorder %s114, %s117
      %p123 = scmp.eq.s32.totalorder %s26, 0
      %p124 = por %p122, %p123
      %p125 = scmp.ne.s32.totalorder %s114, %s117
      %p126 = scmp.eq.s32.totalorder %s31, 1
      %p127 = por %p125, %p126
      %p128 = scmp.ne.s32.totalorder %s117, %s118
      %p129 = scmp.eq.s32.totalorder %s31, 0
      %p130 = por %p128, %p129
      %p131 = scmp.ne.s32.totalorder %s117, %s118
      %p132 = scmp.eq.s32.totalorder %s32, 1
      %p133 = por %p131, %p132
      %p135 = scmp.ne.s32.totalorder %s118, %s134
      %p136 = scmp.eq.s32.totalorder %s32, 0
      %p137 = por %p135, %p136
      %s138 = ssub.s32 %s26, %s33
      %p139 = scmp.eq.s32.totalorder %s138, 0
      %s141 = sadd.s32 %s140, 1
      %s142 = scalar_select %p139, %s140, %s141
      %p145 = pneg %p139
      %p146 = scmp.eq.s32.totalorder %s26, 1
      %p147 = por %p145, %p146
      %p148 = scmp.ne.s32.totalorder %s140, %s143
      %p149 = scmp.eq.s32.totalorder %s26, 0
      %p150 = por %p148, %p149
      %p151 = scmp.ne.s32.totalorder %s140, %s143
      %p152 = scmp.eq.s32.totalorder %s31, 1
      %p153 = por %p151, %p152
      %p154 = scmp.ne.s32.totalorder %s143, %s144
      %p155 = scmp.eq.s32.totalorder %s31, 0
      %p156 = por %p154, %p155
      %p157 = scmp.ne.s32.totalorder %s143, %s144
      %p158 = scmp.eq.s32.totalorder %s32, 1
      %p159 = por %p157, %p158
      %p161 = scmp.ne.s32.totalorder %s144, %s160
      %p162 = scmp.eq.s32.totalorder %s32, 0
      %p163 = por %p161, %p162
      %s165 = sadd.s32 %s164, 1
      %p168 = scmp.eq.s32.totalorder %s26, 1
      %p169 = scmp.ne.s32.totalorder %s164, %s166
      %p170 = scmp.eq.s32.totalorder %s26, 0
      %p171 = por %p169, %p170
      %p172 = scmp.ne.s32.totalorder %s164, %s166
      %p173 = scmp.eq.s32.totalorder %s31, 1
      %p174 = por %p172, %p173
      %p175 = scmp.ne.s32.totalorder %s166, %s167
      %p176 = scmp.eq.s32.totalorder %s31, 0
      %p177 = por %p175, %p176
      %p178 = scmp.ne.s32.totalorder %s166, %s167
      %p179 = scmp.eq.s32.totalorder %s32, 1
      %p180 = por %p178, %p179
      %p182 = scmp.ne.s32.totalorder %s167, %s181
      %p183 = scmp.eq.s32.totalorder %s32, 0
      %p184 = por %p182, %p183
      %s186 = sadd.s32 %s185, 1
      %p189 = scmp.eq.s32.totalorder %s26, 1
      %p190 = scmp.ne.s32.totalorder %s185, %s187
      %p191 = scmp.eq.s32.totalorder %s26, 0
      %p192 = por %p190, %p191
      %p193 = scmp.ne.s32.totalorder %s185, %s187
      %p194 = scmp.eq.s32.totalorder %s31, 1
      %p195 = por %p193, %p194
      %p196 = scmp.ne.s32.totalorder %s187, %s188
      %p197 = scmp.eq.s32.totalorder %s31, 0
      %p198 = por %p196, %p197
      %p199 = scmp.ne.s32.totalorder %s187, %s188
      %p200 = scmp.eq.s32.totalorder %s32, 1
      %p201 = por %p199, %p200
      %p203 = scmp.ne.s32.totalorder %s188, %s202
      %p204 = scmp.eq.s32.totalorder %s32, 0
      %p205 = por %p203, %p204
      %s207 = sadd.s32 %s206, 1
      %p210 = scmp.eq.s32.totalorder %s26, 1
      %p211 = scmp.ne.s32.totalorder %s206, %s208
      %p212 = scmp.eq.s32.totalorder %s26, 0
      %p213 = por %p211, %p212
      %p214 = scmp.ne.s32.totalorder %s206, %s208
      %p215 = scmp.eq.s32.totalorder %s31, 1
      %p216 = por %p214, %p215
      %p217 = scmp.ne.s32.totalorder %s208, %s209
      %p218 = scmp.eq.s32.totalorder %s31, 0
      %p219 = por %p217, %p218
      %p220 = scmp.ne.s32.totalorder %s208, %s209
      %p221 = scmp.eq.s32.totalorder %s32, 1
      %p222 = por %p220, %p221
      %p224 = scmp.ne.s32.totalorder %s209, %s223
      %p225 = scmp.eq.s32.totalorder %s32, 0
      %p226 = por %p224, %p225
      %s228 = sadd.s32 %s227, 1
      %p231 = scmp.eq.s32.totalorder %s26, 1
      %p232 = scmp.ne.s32.totalorder %s227, %s229
      %p233 = scmp.eq.s32.totalorder %s26, 0
      %p234 = por %p232, %p233
      %p235 = scmp.ne.s32.totalorder %s227, %s229
      %p236 = scmp.eq.s32.totalorder %s31, 1
      %p237 = por %p235, %p236
      %p238 = scmp.ne.s32.totalorder %s229, %s230
      %p239 = scmp.eq.s32.totalorder %s31, 0
      %p240 = por %p238, %p239
      %p241 = scmp.ne.s32.totalorder %s229, %s230
      %p242 = scmp.eq.s32.totalorder %s32, 1
      %p243 = por %p241, %p242
      %p245 = scmp.ne.s32.totalorder %s230, %s244
      %p246 = scmp.eq.s32.totalorder %s32, 0
      %p247 = por %p245, %p246
      %s249 = sadd.s32 %s248, 1
      %p252 = scmp.eq.s32.totalorder %s26, 1
      %p253 = scmp.ne.s32.totalorder %s248, %s250
      %p254 = scmp.eq.s32.totalorder %s26, 0
      %p255 = por %p253, %p254
      %p256 = scmp.ne.s32.totalorder %s248, %s250
      %p257 = scmp.eq.s32.totalorder %s31, 1
      %p258 = por %p256, %p257
      %p259 = scmp.ne.s32.totalorder %s250, %s251
      %p260 = scmp.eq.s32.totalorder %s31, 0
      %p261 = por %p259, %p260
      %p262 = scmp.ne.s32.totalorder %s250, %s251
      %p263 = scmp.eq.s32.totalorder %s32, 1
      %p264 = por %p262, %p263
      %p266 = scmp.ne.s32.totalorder %s251, %s265
      %p267 = scmp.eq.s32.totalorder %s32, 0
      %p268 = por %p266, %p267
      %s270 = sadd.s32 %s269, 1
      %p273 = scmp.eq.s32.totalorder %s26, 1
      %p274 = scmp.ne.s32.totalorder %s269, %s271
      %p275 = scmp.eq.s32.totalorder %s26, 0
      %p276 = por %p274, %p275
      %p277 = scmp.ne.s32.totalorder %s269, %s271
      %p278 = scmp.eq.s32.totalorder %s31, 1
      %p279 = por %p277, %p278
      %p280 = scmp.ne.s32.totalorder %s271, %s272
      %p281 = scmp.eq.s32.totalorder %s31, 0
      %p282 = por %p280, %p281
      %p283 = scmp.ne.s32.totalorder %s271, %s272
      %p284 = scmp.eq.s32.totalorder %s32, 1
      %p285 = por %p283, %p284
      %p287 = scmp.ne.s32.totalorder %s272, %s286
      %p288 = scmp.eq.s32.totalorder %s32, 0
      %p289 = por %p287, %p288
      %s291 = sadd.s32 %s290, 1
      %p294 = scmp.eq.s32.totalorder %s26, 1
      %p295 = scmp.ne.s32.totalorder %s290, %s292
      %p296 = scmp.eq.s32.totalorder %s26, 0
      %p297 = por %p295, %p296
      %p298 = scmp.ne.s32.totalorder %s290, %s292
      %p299 = scmp.eq.s32.totalorder %s31, 1
      %p300 = por %p298, %p299
      %p301 = scmp.ne.s32.totalorder %s292, %s293
      %p302 = scmp.eq.s32.totalorder %s31, 0
      %p303 = por %p301, %p302
      %p304 = scmp.ne.s32.totalorder %s292, %s293
      %p305 = scmp.eq.s32.totalorder %s32, 1
      %p306 = por %p304, %p305
      %p308 = scmp.ne.s32.totalorder %s293, %s307
      %p309 = scmp.eq.s32.totalorder %s32, 0
      %p310 = por %p308, %p309
      %s312 = sadd.s32 %s311, 1
      %p315 = scmp.eq.s32.totalorder %s26, 1
      %p316 = scmp.ne.s32.totalorder %s311, %s313
      %p317 = scmp.eq.s32.totalorder %s26, 0
      %p318 = por %p316, %p317
      %p319 = scmp.ne.s32.totalorder %s311, %s313
      %p320 = scmp.eq.s32.totalorder %s31, 1
      %p321 = por %p319, %p320
      %p322 = scmp.ne.s32.totalorder %s313, %s314
      %p323 = scmp.eq.s32.totalorder %s31, 0
      %p324 = por %p322, %p323
      %p325 = scmp.ne.s32.totalorder %s313, %s314
      %p326 = scmp.eq.s32.totalorder %s32, 1
      %p327 = por %p325, %p326
      %p329 = scmp.ne.s32.totalorder %s314, %s328
      %p330 = scmp.eq.s32.totalorder %s32, 0
      %p331 = por %p329, %p330
      %s332 = ssub.s32 %s26, %s33
      %p333 = scmp.eq.s32.totalorder %s332, 0
      %s335 = sadd.s32 %s334, 1
      %s336 = scalar_select %p333, %s334, %s335
      %p339 = pneg %p333
      %p340 = scmp.eq.s32.totalorder %s26, 1
      %p341 = por %p339, %p340
      %p342 = scmp.ne.s32.totalorder %s334, %s337
      %p343 = scmp.eq.s32.totalorder %s26, 0
      %p344 = por %p342, %p343
      %p345 = scmp.ne.s32.totalorder %s334, %s337
      %p346 = scmp.eq.s32.totalorder %s31, 1
      %p347 = por %p345, %p346
      %p348 = scmp.ne.s32.totalorder %s337, %s338
      %p349 = scmp.eq.s32.totalorder %s31, 0
      %p350 = por %p348, %p349
      %p351 = scmp.ne.s32.totalorder %s337, %s338
      %p352 = scmp.eq.s32.totalorder %s32, 1
      %p353 = por %p351, %p352
      %p355 = scmp.ne.s32.totalorder %s338, %s354
      %p356 = scmp.eq.s32.totalorder %s32, 0
      %p357 = por %p355, %p356
      %s358 = ssub.s32 %s26, %s33
      %p359 = scmp.eq.s32.totalorder %s358, 0
      %s361 = sadd.s32 %s360, 1
      %s362 = scalar_select %p359, %s360, %s361
      %p365 = pneg %p359
      %p366 = scmp.eq.s32.totalorder %s26, 1
      %p367 = por %p365, %p366
      %p368 = scmp.ne.s32.totalorder %s360, %s363
      %p369 = scmp.eq.s32.totalorder %s26, 0
      %p370 = por %p368, %p369
      %p371 = scmp.ne.s32.totalorder %s360, %s363
      %p372 = scmp.eq.s32.totalorder %s31, 1
      %p373 = por %p371, %p372
      %p374 = scmp.ne.s32.totalorder %s363, %s364
      %p375 = scmp.eq.s32.totalorder %s31, 0
      %p376 = por %p374, %p375
      %p377 = scmp.ne.s32.totalorder %s363, %s364
      %p378 = scmp.eq.s32.totalorder %s32, 1
      %p379 = por %p377, %p378
      %p381 = scmp.ne.s32.totalorder %s364, %s380
      %p382 = scmp.eq.s32.totalorder %s32, 0
      %p383 = por %p381, %p382
      %s384 = ssub.s32 %s26, %s33
      %p385 = scmp.eq.s32.totalorder %s384, 0
      %s387 = sadd.s32 %s386, 1
      %s388 = scalar_select %p385, %s386, %s387
      %p391 = pneg %p385
      %p392 = scmp.eq.s32.totalorder %s26, 1
      %p393 = por %p391, %p392
      %p394 = scmp.ne.s32.totalorder %s386, %s389
      %p395 = scmp.eq.s32.totalorder %s26, 0
      %p396 = por %p394, %p395
      %p397 = scmp.ne.s32.totalorder %s386, %s389
      %p398 = scmp.eq.s32.totalorder %s31, 1
      %p399 = por %p397, %p398
      %p400 = scmp.ne.s32.totalorder %s389, %s390
      %p401 = scmp.eq.s32.totalorder %s31, 0
      %p402 = por %p400, %p401
      %p403 = scmp.ne.s32.totalorder %s389, %s390
      %p404 = scmp.eq.s32.totalorder %s32, 1
      %p405 = por %p403, %p404
      %p407 = scmp.ne.s32.totalorder %s390, %s406
      %p408 = scmp.eq.s32.totalorder %s32, 0
      %p409 = por %p407, %p408
      %s410 = ssub.s32 %s26, %s33
      %p411 = scmp.eq.s32.totalorder %s410, 0
      %s413 = sadd.s32 %s412, 1
      %s414 = scalar_select %p411, %s412, %s413
      %p417 = pneg %p411
      %p418 = scmp.eq.s32.totalorder %s26, 1
      %p419 = por %p417, %p418
      %p420 = scmp.ne.s32.totalorder %s412, %s415
      %p421 = scmp.eq.s32.totalorder %s26, 0
      %p422 = por %p420, %p421
      %p423 = scmp.ne.s32.totalorder %s412, %s415
      %p424 = scmp.eq.s32.totalorder %s31, 1
      %p425 = por %p423, %p424
      %p426 = scmp.ne.s32.totalorder %s415, %s416
      %p427 = scmp.eq.s32.totalorder %s31, 0
      %p428 = por %p426, %p427
      %p429 = scmp.ne.s32.totalorder %s415, %s416
      %p430 = scmp.eq.s32.totalorder %s32, 1
      %p431 = por %p429, %p430
      %p433 = scmp.ne.s32.totalorder %s416, %s432
      %p434 = scmp.eq.s32.totalorder %s32, 0
      %p435 = por %p433, %p434
      %s436 = ssub.s32 %s26, %s33
      %p437 = scmp.eq.s32.totalorder %s436, 0
      %s439 = sadd.s32 %s438, 1
      %s440 = scalar_select %p437, %s438, %s439
      %p443 = pneg %p437
      %p444 = scmp.eq.s32.totalorder %s26, 1
      %p445 = por %p443, %p444
      %p446 = scmp.ne.s32.totalorder %s438, %s441
      %p447 = scmp.eq.s32.totalorder %s26, 0
      %p448 = por %p446, %p447
      %p449 = scmp.ne.s32.totalorder %s438, %s441
      %p450 = scmp.eq.s32.totalorder %s31, 1
      %p451 = por %p449, %p450
      %p452 = scmp.ne.s32.totalorder %s441, %s442
      %p453 = scmp.eq.s32.totalorder %s31, 0
      %p454 = por %p452, %p453
      %p455 = scmp.ne.s32.totalorder %s441, %s442
      %p456 = scmp.eq.s32.totalorder %s32, 1
      %p457 = por %p455, %p456
      %p459 = scmp.ne.s32.totalorder %s442, %s458
      %p460 = scmp.eq.s32.totalorder %s32, 0
      %p461 = por %p459, %p460
      %p462 = scmp.le.s32.totalorder 1, %s26
      %p463 = scmp.lt.s32.totalorder %s26, 3
      %p464 = pnand %p462, %p463
      %p465 = pneg %p464
      // Predicated region
      $region9: #{_forward_jit.1} parent=5 // pred_check
        _
      $region10: #{_forward_jit.1} parent=5 // pred_check_branch
        %467 = sbr.rel (%p464) target = $region12
      $region11: #{_forward_jit.1} parent=5 // pred_region
        %s468 = ssub.s32 %s26, 1
        // Predicated region
        $region13: #{_forward_jit.1} parent=11 // pred_check
          %p469 = pneg %p177
        $region14: #{_forward_jit.1} parent=11 // pred_check_branch
          %471 = sbr.rel (%p469) target = $region16
        $region15: #{_forward_jit.1} parent=11 // pred_region
          _
        $region16: #{_forward_jit.1} parent=11 // pred_fallthru
          _
        // Predicated region
        $region17: #{_forward_jit.1} parent=11 // pred_check
          %p472 = pneg %p198
        $region18: #{_forward_jit.1} parent=11 // pred_check_branch
          %474 = sbr.rel (%p472) target = $region20
        $region19: #{_forward_jit.1} parent=11 // pred_region
          _
        $region20: #{_forward_jit.1} parent=11 // pred_fallthru
          _
        // Predicated region
        $region21: #{_forward_jit.1} parent=11 // pred_check
          %p475 = pneg %p219
        $region22: #{_forward_jit.1} parent=11 // pred_check_branch
          %477 = sbr.rel (%p475) target = $region24
        $region23: #{_forward_jit.1} parent=11 // pred_region
          _
        $region24: #{_forward_jit.1} parent=11 // pred_fallthru
          _
        // Predicated region
        $region25: #{_forward_jit.1} parent=11 // pred_check
          %p478 = pneg %p240
        $region26: #{_forward_jit.1} parent=11 // pred_check_branch
          %480 = sbr.rel (%p478) target = $region28
        $region27: #{_forward_jit.1} parent=11 // pred_region
          _
        $region28: #{_forward_jit.1} parent=11 // pred_fallthru
          _
        // Predicated region
        $region29: #{_forward_jit.1} parent=11 // pred_check
          %p481 = pneg %p261
        $region30: #{_forward_jit.1} parent=11 // pred_check_branch
          %483 = sbr.rel (%p481) target = $region32
        $region31: #{_forward_jit.1} parent=11 // pred_region
          _
        $region32: #{_forward_jit.1} parent=11 // pred_fallthru
          _
        // Predicated region
        $region33: #{_forward_jit.1} parent=11 // pred_check
          %p484 = pneg %p282
        $region34: #{_forward_jit.1} parent=11 // pred_check_branch
          %486 = sbr.rel (%p484) target = $region36
        $region35: #{_forward_jit.1} parent=11 // pred_region
          _
        $region36: #{_forward_jit.1} parent=11 // pred_fallthru
          _
        // Predicated region
        $region37: #{_forward_jit.1} parent=11 // pred_check
          %p487 = pneg %p303
        $region38: #{_forward_jit.1} parent=11 // pred_check_branch
          %489 = sbr.rel (%p487) target = $region40
        $region39: #{_forward_jit.1} parent=11 // pred_region
          _
        $region40: #{_forward_jit.1} parent=11 // pred_fallthru
          _
        // Predicated region
        $region41: #{_forward_jit.1} parent=11 // pred_check
          %p490 = pneg %p324
        $region42: #{_forward_jit.1} parent=11 // pred_check_branch
          %492 = sbr.rel (%p490) target = $region44
        $region43: #{_forward_jit.1} parent=11 // pred_region
          _
        $region44: #{_forward_jit.1} parent=11 // pred_fallthru
          _
      $region12: #{_forward_jit.1} parent=5 // pred_fallthru
        _
      %p493 = scmp.lt.s32.totalorder %s26, 2
      // Predicated region
      $region45: #{_forward_jit.1} parent=5 // pred_check
        %p494 = pneg %p493
      $region46: #{_forward_jit.1} parent=5 // pred_check_branch
        %496 = sbr.rel (%p494) target = $region48
      $region47: #{_forward_jit.1} parent=5 // pred_region
        // Predicated region
        $region49: #{_forward_jit.1} parent=47 // pred_check
          %p497 = pneg %p46
        $region50: #{_forward_jit.1} parent=47 // pred_check_branch
          %499 = sbr.rel (%p497) target = $region52
        $region51: #{_forward_jit.1} parent=47 // pred_region
          %s500 = smul.u32 2, %s26
          %p501 = scmp.lt.s32.totalorder %s500, 3
          %s502 = scalar_select %p501, %s500, 3
          %s503 = scalar_lea.vmem %s0, %s502
          %s504 = smul.u32 2, %s26
        $region52: #{_forward_jit.1} parent=47 // pred_fallthru
          _
        // Predicated region
        $region53: #{_forward_jit.1} parent=47 // pred_check
          %p505 = pneg %p72
        $region54: #{_forward_jit.1} parent=47 // pred_check_branch
          %507 = sbr.rel (%p505) target = $region56
        $region55: #{_forward_jit.1} parent=47 // pred_region
          %s508 = sand.u32 %s62, 1
          %s509 = sand.u32 %s62, 1
          %s510 = smul.addr %s509, 48
          %s511 = scalar_lea.vmem [#allocation3], %s510
          %s512 = smul.u32 2, %s26
          %s513 = smul.addr %s512, 8
          %s514 = scalar_lea.vmem %s1, %s513
          // Predicated region
          $region57: #{_forward_jit.1} parent=55 // pred_check
            _
          $region58: #{_forward_jit.1} parent=55 // pred_check_branch
            %516 = sbr.rel (0) target = $region60
          $region59: #{_forward_jit.1} parent=55 // pred_region
            // Predicated region
            $region61: #{_forward_jit.1} parent=59 // pred_check
              _
            $region62: #{_forward_jit.1} parent=59 // pred_check_branch
              %518 = sbr.rel (0) target = $region64
            $region63: #{_forward_jit.1} parent=59 // pred_region
              loop: start=0, step=1, limit=1
              $region65: #{_forward_jit.1} parent=63 // loop_pre_header
                _
              $region66: #{_forward_jit.1} parent=63 // loop_header
                %s520 = sphi 0, %s524
                %p521 = scmp.ge.s32.totalorder %s520, 1
                %s525 = sphi %s514, %s514
                %s526 = sphi %s511, %s511
              $region67: #{_forward_jit.1} parent=63 // loop_header_branch
                %523 = sbr.rel (%p521) target = $region71
              $region68: #{_forward_jit.1} parent=63 // loop_body
                %v527 = vld [vmem:[%s525] sm:$0xff]
                %528 = vst [vmem:[%s526] sm:$0xff] %v527
                %v529 = vld [vmem:[%s525 + $0x8] sm:$0xff]
                %530 = vst [vmem:[%s526 + $0x8] sm:$0xff] %v529
                %v531 = vld [vmem:[%s525 + $0x20] sm:$0xff]
                %532 = vst [vmem:[%s526 + $0x10] sm:$0xff] %v531
                %v533 = vld [vmem:[%s525 + $0x28] sm:$0xff]
                %534 = vst [vmem:[%s526 + $0x18] sm:$0xff] %v533
                %v535 = vld [vmem:[%s525 + $0x40] sm:$0xff]
                %536 = vst [vmem:[%s526 + $0x20] sm:$0xff] %v535
                %v537 = vld [vmem:[%s525 + $0x48] sm:$0xff]
                %538 = vst [vmem:[%s526 + $0x28] sm:$0xff] %v537
              $region69: #{_forward_jit.1} parent=63 // loop_footer
                %s524 = sadd.s32 1, %s520
              $region70: #{_forward_jit.1} parent=63 // loop_footer_branch
                %519 = sbr.rel target = $region66
              $region71: #{_forward_jit.1} parent=63 // loop_exit
                _
            $region64: #{_forward_jit.1} parent=59 // pred_fallthru
              _
            // Predicated region
            $region72: #{_forward_jit.1} parent=59 // pred_check
              _
            $region73: #{_forward_jit.1} parent=59 // pred_check_branch
              %540 = sbr.rel target = $region75
            $region74: #{_forward_jit.1} parent=59 // pred_region
              _
            $region75: #{_forward_jit.1} parent=59 // pred_fallthru
              _
          $region60: #{_forward_jit.1} parent=55 // pred_fallthru
            _
          %541 = vnop
        $region56: #{_forward_jit.1} parent=47 // pred_fallthru
          _
        // Predicated region
        $region76: #{_forward_jit.1} parent=47 // pred_check
          %p542 = pneg %p98
        $region77: #{_forward_jit.1} parent=47 // pred_check_branch
          %544 = sbr.rel (%p542) target = $region79
        $region78: #{_forward_jit.1} parent=47 // pred_region
          %s545 = sand.u32 %s88, 1
          %s546 = sand.u32 %s88, 1
          %s547 = smul.addr %s546, 48
          %s548 = scalar_lea.vmem [#allocation4], %s547
          %s549 = smul.u32 2, %s26
          %s550 = smul.addr %s549, 8
          %s551 = scalar_lea.vmem %s2, %s550
          // Predicated region
          $region80: #{_forward_jit.1} parent=78 // pred_check
            _
          $region81: #{_forward_jit.1} parent=78 // pred_check_branch
            %553 = sbr.rel (0) target = $region83
          $region82: #{_forward_jit.1} parent=78 // pred_region
            // Predicated region
            $region84: #{_forward_jit.1} parent=82 // pred_check
              _
            $region85: #{_forward_jit.1} parent=82 // pred_check_branch
              %555 = sbr.rel (0) target = $region87
            $region86: #{_forward_jit.1} parent=82 // pred_region
              loop: start=0, step=1, limit=1
              $region88: #{_forward_jit.1} parent=86 // loop_pre_header
                _
              $region89: #{_forward_jit.1} parent=86 // loop_header
                %s557 = sphi 0, %s561
                %p558 = scmp.ge.s32.totalorder %s557, 1
                %s562 = sphi %s551, %s551
                %s563 = sphi %s548, %s548
              $region90: #{_forward_jit.1} parent=86 // loop_header_branch
                %560 = sbr.rel (%p558) target = $region94
              $region91: #{_forward_jit.1} parent=86 // loop_body
                %v564 = vld [vmem:[%s562] sm:$0xff]
                %565 = vst [vmem:[%s563] sm:$0xff] %v564
                %v566 = vld [vmem:[%s562 + $0x8] sm:$0xff]
                %567 = vst [vmem:[%s563 + $0x8] sm:$0xff] %v566
                %v568 = vld [vmem:[%s562 + $0x20] sm:$0xff]
                %569 = vst [vmem:[%s563 + $0x10] sm:$0xff] %v568
                %v570 = vld [vmem:[%s562 + $0x28] sm:$0xff]
                %571 = vst [vmem:[%s563 + $0x18] sm:$0xff] %v570
                %v572 = vld [vmem:[%s562 + $0x40] sm:$0xff]
                %573 = vst [vmem:[%s563 + $0x20] sm:$0xff] %v572
                %v574 = vld [vmem:[%s562 + $0x48] sm:$0xff]
                %575 = vst [vmem:[%s563 + $0x28] sm:$0xff] %v574
              $region92: #{_forward_jit.1} parent=86 // loop_footer
                %s561 = sadd.s32 1, %s557
              $region93: #{_forward_jit.1} parent=86 // loop_footer_branch
                %556 = sbr.rel target = $region89
              $region94: #{_forward_jit.1} parent=86 // loop_exit
                _
            $region87: #{_forward_jit.1} parent=82 // pred_fallthru
              _
            // Predicated region
            $region95: #{_forward_jit.1} parent=82 // pred_check
              _
            $region96: #{_forward_jit.1} parent=82 // pred_check_branch
              %577 = sbr.rel target = $region98
            $region97: #{_forward_jit.1} parent=82 // pred_region
              _
            $region98: #{_forward_jit.1} parent=82 // pred_fallthru
              _
          $region83: #{_forward_jit.1} parent=78 // pred_fallthru
            _
          %578 = vnop
        $region79: #{_forward_jit.1} parent=47 // pred_fallthru
          _
        // Predicated region
        $region99: #{_forward_jit.1} parent=47 // pred_check
          %p579 = pneg %p124
        $region100: #{_forward_jit.1} parent=47 // pred_check_branch
          %581 = sbr.rel (%p579) target = $region102
        $region101: #{_forward_jit.1} parent=47 // pred_region
          %s582 = sand.u32 %s114, 1
          %s583 = sand.u32 %s114, 1
          %s584 = smul.addr %s583, 48
          %s585 = scalar_lea.vmem [#allocation5], %s584
          %s586 = smul.u32 2, %s26
          %s587 = smul.addr %s586, 8
          %s588 = scalar_lea.vmem %s3, %s587
          // Predicated region
          $region103: #{_forward_jit.1} parent=101 // pred_check
            _
          $region104: #{_forward_jit.1} parent=101 // pred_check_branch
            %590 = sbr.rel (0) target = $region106
          $region105: #{_forward_jit.1} parent=101 // pred_region
            // Predicated region
            $region107: #{_forward_jit.1} parent=105 // pred_check
              _
            $region108: #{_forward_jit.1} parent=105 // pred_check_branch
              %592 = sbr.rel (0) target = $region110
            $region109: #{_forward_jit.1} parent=105 // pred_region
              loop: start=0, step=1, limit=1
              $region111: #{_forward_jit.1} parent=109 // loop_pre_header
                _
              $region112: #{_forward_jit.1} parent=109 // loop_header
                %s594 = sphi 0, %s598
                %p595 = scmp.ge.s32.totalorder %s594, 1
                %s599 = sphi %s588, %s588
                %s600 = sphi %s585, %s585
              $region113: #{_forward_jit.1} parent=109 // loop_header_branch
                %597 = sbr.rel (%p595) target = $region117
              $region114: #{_forward_jit.1} parent=109 // loop_body
                %v601 = vld [vmem:[%s599] sm:$0xff]
                %602 = vst [vmem:[%s600] sm:$0xff] %v601
                %v603 = vld [vmem:[%s599 + $0x8] sm:$0xff]
                %604 = vst [vmem:[%s600 + $0x8] sm:$0xff] %v603
                %v605 = vld [vmem:[%s599 + $0x20] sm:$0xff]
                %606 = vst [vmem:[%s600 + $0x10] sm:$0xff] %v605
                %v607 = vld [vmem:[%s599 + $0x28] sm:$0xff]
                %608 = vst [vmem:[%s600 + $0x18] sm:$0xff] %v607
                %v609 = vld [vmem:[%s599 + $0x40] sm:$0xff]
                %610 = vst [vmem:[%s600 + $0x20] sm:$0xff] %v609
                %v611 = vld [vmem:[%s599 + $0x48] sm:$0xff]
                %612 = vst [vmem:[%s600 + $0x28] sm:$0xff] %v611
              $region115: #{_forward_jit.1} parent=109 // loop_footer
                %s598 = sadd.s32 1, %s594
              $region116: #{_forward_jit.1} parent=109 // loop_footer_branch
                %593 = sbr.rel target = $region112
              $region117: #{_forward_jit.1} parent=109 // loop_exit
                _
            $region110: #{_forward_jit.1} parent=105 // pred_fallthru
              _
            // Predicated region
            $region118: #{_forward_jit.1} parent=105 // pred_check
              _
            $region119: #{_forward_jit.1} parent=105 // pred_check_branch
              %614 = sbr.rel target = $region121
            $region120: #{_forward_jit.1} parent=105 // pred_region
              _
            $region121: #{_forward_jit.1} parent=105 // pred_fallthru
              _
          $region106: #{_forward_jit.1} parent=101 // pred_fallthru
            _
          %615 = vnop
        $region102: #{_forward_jit.1} parent=47 // pred_fallthru
          _
        // Predicated region
        $region122: #{_forward_jit.1} parent=47 // pred_check
          %p616 = pneg %p150
        $region123: #{_forward_jit.1} parent=47 // pred_check_branch
          %618 = sbr.rel (%p616) target = $region125
        $region124: #{_forward_jit.1} parent=47 // pred_region
          %s619 = sand.u32 %s140, 1
          %s620 = sand.u32 %s140, 1
          %s621 = smul.addr %s620, 48
          %s622 = scalar_lea.vmem [#allocation6], %s621
          %s623 = smul.u32 2, %s26
          %s624 = smul.addr %s623, 8
          %s625 = scalar_lea.vmem %s4, %s624
          // Predicated region
          $region126: #{_forward_jit.1} parent=124 // pred_check
            _
          $region127: #{_forward_jit.1} parent=124 // pred_check_branch
            %627 = sbr.rel (0) target = $region129
          $region128: #{_forward_jit.1} parent=124 // pred_region
            // Predicated region
            $region130: #{_forward_jit.1} parent=128 // pred_check
              _
            $region131: #{_forward_jit.1} parent=128 // pred_check_branch
              %629 = sbr.rel (0) target = $region133
            $region132: #{_forward_jit.1} parent=128 // pred_region
              loop: start=0, step=1, limit=1
              $region134: #{_forward_jit.1} parent=132 // loop_pre_header
                _
              $region135: #{_forward_jit.1} parent=132 // loop_header
                %s631 = sphi 0, %s635
                %p632 = scmp.ge.s32.totalorder %s631, 1
                %s636 = sphi %s625, %s625
                %s637 = sphi %s622, %s622
              $region136: #{_forward_jit.1} parent=132 // loop_header_branch
                %634 = sbr.rel (%p632) target = $region140
              $region137: #{_forward_jit.1} parent=132 // loop_body
                %v638 = vld [vmem:[%s636] sm:$0xff]
                %639 = vst [vmem:[%s637] sm:$0xff] %v638
                %v640 = vld [vmem:[%s636 + $0x8] sm:$0xff]
                %641 = vst [vmem:[%s637 + $0x8] sm:$0xff] %v640
                %v642 = vld [vmem:[%s636 + $0x20] sm:$0xff]
                %643 = vst [vmem:[%s637 + $0x10] sm:$0xff] %v642
                %v644 = vld [vmem:[%s636 + $0x28] sm:$0xff]
                %645 = vst [vmem:[%s637 + $0x18] sm:$0xff] %v644
                %v646 = vld [vmem:[%s636 + $0x40] sm:$0xff]
                %647 = vst [vmem:[%s637 + $0x20] sm:$0xff] %v646
                %v648 = vld [vmem:[%s636 + $0x48] sm:$0xff]
                %649 = vst [vmem:[%s637 + $0x28] sm:$0xff] %v648
              $region138: #{_forward_jit.1} parent=132 // loop_footer
                %s635 = sadd.s32 1, %s631
              $region139: #{_forward_jit.1} parent=132 // loop_footer_branch
                %630 = sbr.rel target = $region135
              $region140: #{_forward_jit.1} parent=132 // loop_exit
                _
            $region133: #{_forward_jit.1} parent=128 // pred_fallthru
              _
            // Predicated region
            $region141: #{_forward_jit.1} parent=128 // pred_check
              _
            $region142: #{_forward_jit.1} parent=128 // pred_check_branch
              %651 = sbr.rel target = $region144
            $region143: #{_forward_jit.1} parent=128 // pred_region
              _
            $region144: #{_forward_jit.1} parent=128 // pred_fallthru
              _
          $region129: #{_forward_jit.1} parent=124 // pred_fallthru
            _
          %652 = vnop
        $region125: #{_forward_jit.1} parent=47 // pred_fallthru
          _
      $region48: #{_forward_jit.1} parent=5 // pred_fallthru
        _
      %p653 = scmp.le.s32.totalorder 1, %s26
      %p654 = scmp.lt.s32.totalorder %s26, 3
      %p655 = pnand %p653, %p654
      %p656 = pneg %p655
      // Predicated region
      $region145: #{_forward_jit.1} parent=5 // pred_check
        _
      $region146: #{_forward_jit.1} parent=5 // pred_check_branch
        %658 = sbr.rel (%p655) target = $region148
      $region147: #{_forward_jit.1} parent=5 // pred_region
        %s659 = ssub.s32 %s26, 1
        %s660 = sand.u32 %s65, 1
        %s661 = sand.u32 %s65, 1
        %s662 = smul.addr %s661, 48
        %s663 = scalar_lea.vmem [#allocation3], %s662
        // Predicated region
        $region149: #{_forward_jit.1} parent=147 // pred_check
          %p664 = pneg %p78
        $region150: #{_forward_jit.1} parent=147 // pred_check_branch
          %666 = sbr.rel (%p664) target = $region152
        $region151: #{_forward_jit.1} parent=147 // pred_region
          _
        $region152: #{_forward_jit.1} parent=147 // pred_fallthru
          _
        %s667 = sand.u32 %s91, 1
        %s668 = sand.u32 %s91, 1
        %s669 = smul.addr %s668, 48
        %s670 = scalar_lea.vmem [#allocation4], %s669
        // Predicated region
        $region153: #{_forward_jit.1} parent=147 // pred_check
          %p671 = pneg %p104
        $region154: #{_forward_jit.1} parent=147 // pred_check_branch
          %673 = sbr.rel (%p671) target = $region156
        $region155: #{_forward_jit.1} parent=147 // pred_region
          _
        $region156: #{_forward_jit.1} parent=147 // pred_fallthru
          _
        %s674 = sand.u32 %s117, 1
        %s675 = sand.u32 %s117, 1
        %s676 = smul.addr %s675, 48
        %s677 = scalar_lea.vmem [#allocation5], %s676
        // Predicated region
        $region157: #{_forward_jit.1} parent=147 // pred_check
          %p678 = pneg %p130
        $region158: #{_forward_jit.1} parent=147 // pred_check_branch
          %680 = sbr.rel (%p678) target = $region160
        $region159: #{_forward_jit.1} parent=147 // pred_region
          _
        $region160: #{_forward_jit.1} parent=147 // pred_fallthru
          _
        %s681 = sand.u32 %s143, 1
        %s682 = sand.u32 %s143, 1
        %s683 = smul.addr %s682, 48
        %s684 = scalar_lea.vmem [#allocation6], %s683
        // Predicated region
        $region161: #{_forward_jit.1} parent=147 // pred_check
          %p685 = pneg %p156
        $region162: #{_forward_jit.1} parent=147 // pred_check_branch
          %687 = sbr.rel (%p685) target = $region164
        $region163: #{_forward_jit.1} parent=147 // pred_region
          _
        $region164: #{_forward_jit.1} parent=147 // pred_fallthru
          _
        %s688 = smul.u32 2, %s31
        %p689 = scmp.lt.s32.totalorder %s688, 3
        %s690 = scalar_select %p689, %s688, 3
        %s691 = scalar_lea.vmem %s0, %s690
        %p692 = pneg %p52
        %p693 = pneg %p49
        %s694 = sand.u32 %s65, 1
        %s695 = sand.u32 %s65, 1
        %s696 = smul.addr %s695, 48
        %s697 = scalar_lea.vmem [#allocation3], %s696
        %p698 = pneg %p78
        %p699 = pneg %p75
        %s700 = sand.u32 %s91, 1
        %s701 = sand.u32 %s91, 1
        %s702 = smul.addr %s701, 48
        %s703 = scalar_lea.vmem [#allocation4], %s702
        %p704 = pneg %p104
        %p705 = pneg %p101
        %s706 = sand.u32 %s117, 1
        %s707 = sand.u32 %s117, 1
        %s708 = smul.addr %s707, 48
        %s709 = scalar_lea.vmem [#allocation5], %s708
        %p710 = pneg %p130
        %p711 = pneg %p127
        %s712 = sand.u32 %s143, 1
        %s713 = sand.u32 %s143, 1
        %s714 = smul.addr %s713, 48
        %s715 = scalar_lea.vmem [#allocation6], %s714
        %p716 = pneg %p156
        %p717 = pneg %p153
        %p718 = pneg %p177
        %p719 = pneg %p174
        %p720 = pneg %p198
        %p721 = pneg %p195
        %p722 = pneg %p219
        %p723 = pneg %p216
        %p724 = pneg %p240
        %p725 = pneg %p237
        %p726 = pneg %p261
        %p727 = pneg %p258
        %p728 = pneg %p282
        %p729 = pneg %p279
        %p730 = pneg %p303
        %p731 = pneg %p300
        %p732 = pneg %p324
        %p733 = pneg %p321
        %p734 = pneg %p350
        %p735 = pneg %p347
        %s736 = smul.u32 2, %s31
        %p737 = scmp.lt.s32.totalorder %s736, 3
        %s738 = scalar_select %p737, %s736, 3
        %s739 = scalar_lea.vmem %s13, %s738
        %p740 = pneg %p376
        %p741 = pneg %p373
        %s742 = sand.u32 %s363, 1
        %s743 = sand.u32 %s363, 1
        %s744 = smul.addr %s743, 48
        %s745 = scalar_lea.vmem [#allocation7], %s744
        %p746 = pneg %p402
        %p747 = pneg %p399
        %s748 = sand.u32 %s389, 1
        %s749 = sand.u32 %s389, 1
        %s750 = smul.addr %s749, 48
        %s751 = scalar_lea.vmem [#allocation8], %s750
        %p752 = pneg %p428
        %p753 = pneg %p425
        %s754 = sand.u32 %s415, 1
        %s755 = sand.u32 %s415, 1
        %s756 = smul.addr %s755, 48
        %s757 = scalar_lea.vmem [#allocation9], %s756
        %p758 = pneg %p454
        %p759 = pneg %p451
        %s760 = sand.u32 %s441, 1
        %s761 = sand.u32 %s441, 1
        %s762 = smul.addr %s761, 48
        %s763 = scalar_lea.vmem [#allocation10], %s762
        %s764 = smul.u32 2, %s31
        %p765 = scmp.lt.s32.totalorder %s764, 3
        %s766 = scalar_select %p765, %s764, 3
        %s767 = scalar_lea.vmem %s0, %s766
        %s768 = smul.u32 2, %s31
        %s769 = smul.u32 2, %s31
        %s770 = smul.u32 2, %s31
        %s771 = smul.u32 2, %s31
        %s772 = smul.u32 2, %s31
        %s773 = smul.u32 2, %s31
        %p774 = scmp.lt.s32.totalorder %s773, 3
        %s775 = scalar_select %p774, %s773, 3
        %s776 = scalar_lea.vmem %s13, %s775
        %s777 = smul.u32 2, %s31
        %s778 = smul.u32 2, %s31
        %s779 = smul.u32 2, %s31
        %s780 = smul.u32 2, %s31
        %s781 = smul.u32 2, %s31
        %v782 = vld [vmem:[%s767] sm:$0x3]
        %v783 = vld [vmem:[%s663] sm:$0xff]
        %v784 = vld [vmem:[%s663 + $0x8] sm:$0xff]
        %v785 = vld [vmem:[%s663 + $0x10] sm:$0xff]
        %v786 = vld [vmem:[%s663 + $0x18] sm:$0xff]
        %v787 = vld [vmem:[%s663 + $0x20] sm:$0xff]
        %v788 = vld [vmem:[%s663 + $0x28] sm:$0xff]
        %v789 = vld [vmem:[%s670] sm:$0xff]
        %v790 = vld [vmem:[%s670 + $0x8] sm:$0xff]
        %v791 = vld [vmem:[%s670 + $0x10] sm:$0xff]
        %v792 = vld [vmem:[%s670 + $0x18] sm:$0xff]
        %v793 = vld [vmem:[%s670 + $0x20] sm:$0xff]
        %v794 = vld [vmem:[%s670 + $0x28] sm:$0xff]
        %v795 = vld [vmem:[%s677] sm:$0xff]
        %v796 = vld [vmem:[%s677 + $0x8] sm:$0xff]
        %v797 = vld [vmem:[%s677 + $0x10] sm:$0xff]
        %v798 = vld [vmem:[%s677 + $0x18] sm:$0xff]
        %v799 = vld [vmem:[%s677 + $0x20] sm:$0xff]
        %v800 = vld [vmem:[%s677 + $0x28] sm:$0xff]
        %v801 = vld [vmem:[%s684] sm:$0xff]
        %v802 = vld [vmem:[%s684 + $0x8] sm:$0xff]
        %v803 = vld [vmem:[%s684 + $0x10] sm:$0xff]
        %v804 = vld [vmem:[%s684 + $0x18] sm:$0xff]
        %v805 = vld [vmem:[%s684 + $0x20] sm:$0xff]
        %v806 = vld [vmem:[%s684 + $0x28] sm:$0xff]
        %v807 = vld [vmem:[%s9] sm:$0xff]
        %v808 = vld [vmem:[%s9 + $0x8] sm:$0xff]
        %v809 = vld [vmem:[%s9 + $0x10] sm:$0xff]
        %v810 = vld [vmem:[%s9 + $0x18] sm:$0xff]
        %v811 = vld [vmem:[%s9 + $0x20] sm:$0xff]
        %v812 = vld [vmem:[%s9 + $0x28] sm:$0xff]
        %v813 = vld [vmem:[%s9 + $0x30] sm:$0xff]
        %v814 = vld [vmem:[%s9 + $0x38] sm:$0xff]
        %v815 = vld [vmem:[%s9 + $0x40] sm:$0xff]
        %v816 = vld [vmem:[%s9 + $0x48] sm:$0xff]
        %v817 = vld [vmem:[%s9 + $0x50] sm:$0xff]
        %v818 = vld [vmem:[%s9 + $0x58] sm:$0xff]
        %vm819 = vcmask 195584
        %v821 = vsel %vm819, %v807, 0
        %v824 = vsel %vm819, %v808, 0
        %v827 = vsel %vm819, %v809, 0
        %v830 = vsel %vm819, %v810, 0
        %v833 = vsel %vm819, %v811, 0
        %v836 = vsel %vm819, %v812, 0
        %v839 = vsel %vm819, %v813, 0
        %v842 = vsel %vm819, %v814, 0
        %v845 = vsel %vm819, %v815, 0
        %v848 = vsel %vm819, %v816, 0
        %v851 = vsel %vm819, %v817, 0
        %v854 = vsel %vm819, %v818, 0
        %856 = vmatprep.subr.mxu0 0.0
        %857 = vmatpush1.msra.mxu0 0.0
        %858 = vmatprep.subr.mxu0 0.0
        %859 = vmatpush1.msra.mxu0 0.0
        %860 = vmatprep.subr.mxu0 0.0
        %861 = vmatpush1.msra.mxu0 0.0
        %862 = vmatprep.subr.mxu0 0.0
        %863 = vmatpush1.msra.mxu0 0.0
        %864 = vmatprep.subr.mxu0 0.0
        %865 = vmatpush1.msra.mxu0 0.0
        %866 = vmatprep.subr.mxu0 0.0
        %867 = vmatpush1.msra.mxu0 0.0
        %868 = vmatprep.subr.mxu0 0.0
        %869 = vmatpush1.msra.mxu0 0.0
        %870 = vmatprep.subr.mxu0 0.0
        %871 = vmatpush1.msra.mxu0 0.0
        %872 = vmatprep.subr.mxu0 0.0
        %873 = vmatpush1.msra.mxu0 0.0
        %874 = vmatprep.subr.mxu0 0.0
        %875 = vmatpush1.msra.mxu0 0.0
        %876 = vmatprep.subr.mxu0 0.0
        %877 = vmatpush1.msra.mxu0 0.0
        %878 = vmatprep.subr.mxu0 0.0
        %879 = vmatpush1.msra.mxu0 0.0
        %880 = vmatprep.subr.mxu0 0.0
        %881 = vmatpush1.msra.mxu0 0.0
        %882 = vmatprep.subr.mxu0 %v800
        %883 = vmatpush1.msra.mxu0 %v799
        %884 = vmatprep.subr.mxu0 %v798
        %885 = vmatpush1.msra.mxu0 %v797
        %886 = vmatprep.subr.mxu0 %v796
        %887 = vmatpush1.msra.mxu0 %v795
        %888 = vmatprep.subr.mxu0 0.0
        %889 = vmatpush2.msra.mxu0 0.0
        %890 = vmatprep.subr.mxu0 0.0
        %891 = vmatpush2.msra.mxu0 0.0
        %892 = vmatprep.subr.mxu0 0.0
        %893 = vmatpush2.msra.mxu0 0.0
        %894 = vmatprep.subr.mxu0 0.0
        %895 = vmatpush2.msra.mxu0 0.0
        %896 = vmatprep.subr.mxu0 0.0
        %897 = vmatpush2.msra.mxu0 0.0
        %898 = vmatprep.subr.mxu0 0.0
        %899 = vmatpush2.msra.mxu0 0.0
        %900 = vmatprep.subr.mxu0 0.0
        %901 = vmatpush2.msra.mxu0 0.0
        %902 = vmatprep.subr.mxu0 0.0
        %903 = vmatpush2.msra.mxu0 0.0
        %904 = vmatprep.subr.mxu0 0.0
        %905 = vmatpush2.msra.mxu0 0.0
        %906 = vmatprep.subr.mxu0 0.0
        %907 = vmatpush2.msra.mxu0 0.0
        %908 = vmatprep.subr.mxu0 0.0
        %909 = vmatpush2.msra.mxu0 0.0
        %910 = vmatprep.subr.mxu0 0.0
        %911 = vmatpush2.msra.mxu0 0.0
        %912 = vmatprep.subr.mxu0 0.0
        %913 = vmatpush2.msra.mxu0 0.0
        %914 = vmatprep.subr.mxu0 0.0
        %915 = vmatpush2.msra.mxu0 0.0
        %916 = vmatprep.subr.mxu0 0.0
        %917 = vmatpush2.msra.mxu0 0.0
        %918 = vmatprep.subr.mxu0 0.0
        %919 = vmatpush2.msra.mxu0 0.0
        %920 = vmatprep.mubr.f32.mxu0 0.0
        %921 = vmatmul.mubr.f32.gmra.mxu0 %v821
        %v922 = vpop.f32.mrf.mxu0
        %v923 = vadd.f32 0.0, %v922
        %v924 = vpop.f32.mrf.mxu0
        %v925 = vadd.f32 0.0, %v924
        %926 = vmatprep.mubr.f32.mxu0 0.0
        %927 = vmatmul.mubr.f32.gmra.mxu0 %v824
        %v928 = vpop.f32.mrf.mxu0
        %v929 = vadd.f32 0.0, %v928
        %v930 = vpop.f32.mrf.mxu0
        %v931 = vadd.f32 0.0, %v930
        %932 = vmatprep.mubr.f32.mxu0 0.0
        %933 = vmatmul.mubr.f32.gmra.mxu0 %v827
        %v934 = vpop.f32.mrf.mxu0
        %v935 = vadd.f32 0.0, %v934
        %v936 = vpop.f32.mrf.mxu0
        %v937 = vadd.f32 0.0, %v936
        %938 = vmatprep.mubr.f32.mxu0 0.0
        %939 = vmatmul.mubr.f32.gmra.mxu0 %v830
        %v940 = vpop.f32.mrf.mxu0
        %v941 = vadd.f32 0.0, %v940
        %v942 = vpop.f32.mrf.mxu0
        %v943 = vadd.f32 0.0, %v942
        %944 = vmatprep.mubr.f32.mxu0 0.0
        %945 = vmatmul.mubr.f32.gmra.mxu0 %v833
        %v946 = vpop.f32.mrf.mxu0
        %v947 = vadd.f32 0.0, %v946
        %v948 = vpop.f32.mrf.mxu0
        %v949 = vadd.f32 0.0, %v948
        %950 = vmatprep.mubr.f32.mxu0 0.0
        %951 = vmatmul.mubr.f32.gmra.mxu0 %v836
        %v952 = vpop.f32.mrf.mxu0
        %v953 = vadd.f32 0.0, %v952
        %v954 = vpop.f32.mrf.mxu0
        %v955 = vadd.f32 0.0, %v954
        %956 = vmatprep.mubr.f32.mxu0 0.0
        %957 = vmatmul.mubr.f32.gmra.mxu0 %v839
        %v958 = vpop.f32.mrf.mxu0
        %v959 = vadd.f32 0.0, %v958
        %v960 = vpop.f32.mrf.mxu0
        %v961 = vadd.f32 0.0, %v960
        %962 = vmatprep.mubr.f32.mxu0 0.0
        %963 = vmatmul.mubr.f32.gmra.mxu0 %v842
        %v964 = vpop.f32.mrf.mxu0
        %v965 = vadd.f32 0.0, %v964
        %v966 = vpop.f32.mrf.mxu0
        %v967 = vadd.f32 0.0, %v966
        %968 = vmatprep.mubr.f32.mxu0 0.0
        %969 = vmatmul.mubr.f32.gmra.mxu0 %v845
        %v970 = vpop.f32.mrf.mxu0
        %v971 = vadd.f32 0.0, %v970
        %v972 = vpop.f32.mrf.mxu0
        %v973 = vadd.f32 0.0, %v972
        %974 = vmatprep.mubr.f32.mxu0 0.0
        %975 = vmatmul.mubr.f32.gmra.mxu0 %v848
        %v976 = vpop.f32.mrf.mxu0
        %v977 = vadd.f32 0.0, %v976
        %v978 = vpop.f32.mrf.mxu0
        %v979 = vadd.f32 0.0, %v978
        %980 = vmatprep.mubr.f32.mxu0 0.0
        %981 = vmatmul.mubr.f32.gmra.mxu0 %v851
        %v982 = vpop.f32.mrf.mxu0
        %v983 = vadd.f32 0.0, %v982
        %v984 = vpop.f32.mrf.mxu0
        %v985 = vadd.f32 0.0, %v984
        %986 = vmatprep.mubr.f32.mxu0 0.0
        %987 = vmatmul.mubr.f32.gmra.mxu0 %v854
        %v988 = vpop.f32.mrf.mxu0
        %v989 = vadd.f32 0.0, %v988
        %v990 = vpop.f32.mrf.mxu0
        %v991 = vadd.f32 0.0, %v990
        %992 = vdwg.mxu0
        %v993 = vld [vmem:[%s5] sm:$0xff]
        %v994 = vld [vmem:[%s5 + $0x8] sm:$0xff]
        %v995 = vld [vmem:[%s5 + $0x10] sm:$0xff]
        %v996 = vld [vmem:[%s5 + $0x18] sm:$0xff]
        %v997 = vld [vmem:[%s5 + $0x20] sm:$0xff]
        %v998 = vld [vmem:[%s5 + $0x28] sm:$0xff]
        %v999 = vld [vmem:[%s5 + $0x30] sm:$0xff]
        %v1000 = vld [vmem:[%s5 + $0x38] sm:$0xff]
        %v1001 = vld [vmem:[%s5 + $0x40] sm:$0xff]
        %v1002 = vld [vmem:[%s5 + $0x48] sm:$0xff]
        %v1003 = vld [vmem:[%s5 + $0x50] sm:$0xff]
        %v1004 = vld [vmem:[%s5 + $0x58] sm:$0xff]
        %1006 = vset.pattern.permute.xlu0 0
        %1007 = vperm.xlu0 %1006, %v993
        %v1008 = vpop.permute.xlu0 %1007
        %1011 = vset.pattern.permute.xlu0 0
        %1012 = vperm.xlu0 %1011, %v994
        %v1013 = vpop.permute.xlu0 %1012
        %1016 = vset.pattern.permute.xlu0 0
        %1017 = vperm.xlu0 %1016, %v995
        %v1018 = vpop.permute.xlu0 %1017
        %1021 = vset.pattern.permute.xlu0 0
        %1022 = vperm.xlu0 %1021, %v996
        %v1023 = vpop.permute.xlu0 %1022
        %1026 = vset.pattern.permute.xlu0 0
        %1027 = vperm.xlu0 %1026, %v997
        %v1028 = vpop.permute.xlu0 %1027
        %1031 = vset.pattern.permute.xlu0 0
        %1032 = vperm.xlu0 %1031, %v998
        %v1033 = vpop.permute.xlu0 %1032
        %1036 = vset.pattern.permute.xlu0 0
        %1037 = vperm.xlu0 %1036, %v999
        %v1038 = vpop.permute.xlu0 %1037
        %1041 = vset.pattern.permute.xlu0 0
        %1042 = vperm.xlu0 %1041, %v1000
        %v1043 = vpop.permute.xlu0 %1042
        %1046 = vset.pattern.permute.xlu0 0
        %1047 = vperm.xlu0 %1046, %v1001
        %v1048 = vpop.permute.xlu0 %1047
        %1051 = vset.pattern.permute.xlu0 0
        %1052 = vperm.xlu0 %1051, %v1002
        %v1053 = vpop.permute.xlu0 %1052
        %1056 = vset.pattern.permute.xlu0 0
        %1057 = vperm.xlu0 %1056, %v1003
        %v1058 = vpop.permute.xlu0 %1057
        %1061 = vset.pattern.permute.xlu0 0
        %1062 = vperm.xlu0 %1061, %v1004
        %v1063 = vpop.permute.xlu0 %1062
        %v1066 = vlaneseq
        %v1067 = vshrl.u32 %v1066, 7
        %v1068 = vsub.s32 0, %v1067
        %v1069 = vrot.slane %v782, %v1068
        %v1070 = vlaneseq
        %v1071 = vshrl.u32 %v1070, 7
        %v1072 = vsub.s32 1, %v1071
        %v1073 = vrot.slane %v782, %v1072
        %v1076 = vmul.f32 %v1008, %v1069
        %v1077 = vmul.f32 %v1008, %v1073
        %v1078 = vmul.f32 %v1013, %v1069
        %v1079 = vmul.f32 %v1013, %v1073
        %v1080 = vmul.f32 %v1018, %v1069
        %v1081 = vmul.f32 %v1018, %v1073
        %v1082 = vmul.f32 %v1023, %v1069
        %v1083 = vmul.f32 %v1023, %v1073
        %v1084 = vmul.f32 %v1028, %v1069
        %v1085 = vmul.f32 %v1028, %v1073
        %v1086 = vmul.f32 %v1033, %v1069
        %v1087 = vmul.f32 %v1033, %v1073
        %v1088 = vmul.f32 %v1038, %v1069
        %v1089 = vmul.f32 %v1038, %v1073
        %v1090 = vmul.f32 %v1043, %v1069
        %v1091 = vmul.f32 %v1043, %v1073
        %v1092 = vmul.f32 %v1048, %v1069
        %v1093 = vmul.f32 %v1048, %v1073
        %v1094 = vmul.f32 %v1053, %v1069
        %v1095 = vmul.f32 %v1053, %v1073
        %v1096 = vmul.f32 %v1058, %v1069
        %v1097 = vmul.f32 %v1058, %v1073
        %v1098 = vmul.f32 %v1063, %v1069
        %v1099 = vmul.f32 %v1063, %v1073
        %v1100 = vld [vmem:[%s6] sm:$0xff]
        %v1101 = vld [vmem:[%s6 + $0x8] sm:$0xff]
        %v1102 = vld [vmem:[%s6 + $0x10] sm:$0xff]
        %v1103 = vld [vmem:[%s6 + $0x18] sm:$0xff]
        %v1104 = vld [vmem:[%s6 + $0x20] sm:$0xff]
        %v1105 = vld [vmem:[%s6 + $0x28] sm:$0xff]
        %v1106 = vld [vmem:[%s6 + $0x30] sm:$0xff]
        %v1107 = vld [vmem:[%s6 + $0x38] sm:$0xff]
        %v1108 = vld [vmem:[%s6 + $0x40] sm:$0xff]
        %v1109 = vld [vmem:[%s6 + $0x48] sm:$0xff]
        %v1110 = vld [vmem:[%s6 + $0x50] sm:$0xff]
        %v1111 = vld [vmem:[%s6 + $0x58] sm:$0xff]
        %v1113 = vsel %vm819, %v1100, 0
        %v1116 = vsel %vm819, %v1101, 0
        %v1119 = vsel %vm819, %v1102, 0
        %v1122 = vsel %vm819, %v1103, 0
        %v1125 = vsel %vm819, %v1104, 0
        %v1128 = vsel %vm819, %v1105, 0
        %v1131 = vsel %vm819, %v1106, 0
        %v1134 = vsel %vm819, %v1107, 0
        %v1137 = vsel %vm819, %v1108, 0
        %v1140 = vsel %vm819, %v1109, 0
        %v1143 = vsel %vm819, %v1110, 0
        %v1146 = vsel %vm819, %v1111, 0
        %1148 = vmatprep.subr.mxu0 0.0
        %1149 = vmatpush1.msra.mxu0 0.0
        %1150 = vmatprep.subr.mxu0 0.0
        %1151 = vmatpush1.msra.mxu0 0.0
        %1152 = vmatprep.subr.mxu0 0.0
        %1153 = vmatpush1.msra.mxu0 0.0
        %1154 = vmatprep.subr.mxu0 0.0
        %1155 = vmatpush1.msra.mxu0 0.0
        %1156 = vmatprep.subr.mxu0 0.0
        %1157 = vmatpush1.msra.mxu0 0.0
        %1158 = vmatprep.subr.mxu0 0.0
        %1159 = vmatpush1.msra.mxu0 0.0
        %1160 = vmatprep.subr.mxu0 0.0
        %1161 = vmatpush1.msra.mxu0 0.0
        %1162 = vmatprep.subr.mxu0 0.0
        %1163 = vmatpush1.msra.mxu0 0.0
        %1164 = vmatprep.subr.mxu0 0.0
        %1165 = vmatpush1.msra.mxu0 0.0
        %1166 = vmatprep.subr.mxu0 0.0
        %1167 = vmatpush1.msra.mxu0 0.0
        %1168 = vmatprep.subr.mxu0 0.0
        %1169 = vmatpush1.msra.mxu0 0.0
        %1170 = vmatprep.subr.mxu0 0.0
        %1171 = vmatpush1.msra.mxu0 0.0
        %1172 = vmatprep.subr.mxu0 0.0
        %1173 = vmatpush1.msra.mxu0 0.0
        %1174 = vmatprep.subr.mxu0 %v788
        %1175 = vmatpush1.msra.mxu0 %v787
        %1176 = vmatprep.subr.mxu0 %v786
        %1177 = vmatpush1.msra.mxu0 %v785
        %1178 = vmatprep.subr.mxu0 %v784
        %1179 = vmatpush1.msra.mxu0 %v783
        %1180 = vmatprep.subr.mxu0 0.0
        %1181 = vmatpush2.msra.mxu0 0.0
        %1182 = vmatprep.subr.mxu0 0.0
        %1183 = vmatpush2.msra.mxu0 0.0
        %1184 = vmatprep.subr.mxu0 0.0
        %1185 = vmatpush2.msra.mxu0 0.0
        %1186 = vmatprep.subr.mxu0 0.0
        %1187 = vmatpush2.msra.mxu0 0.0
        %1188 = vmatprep.subr.mxu0 0.0
        %1189 = vmatpush2.msra.mxu0 0.0
        %1190 = vmatprep.subr.mxu0 0.0
        %1191 = vmatpush2.msra.mxu0 0.0
        %1192 = vmatprep.subr.mxu0 0.0
        %1193 = vmatpush2.msra.mxu0 0.0
        %1194 = vmatprep.subr.mxu0 0.0
        %1195 = vmatpush2.msra.mxu0 0.0
        %1196 = vmatprep.subr.mxu0 0.0
        %1197 = vmatpush2.msra.mxu0 0.0
        %1198 = vmatprep.subr.mxu0 0.0
        %1199 = vmatpush2.msra.mxu0 0.0
        %1200 = vmatprep.subr.mxu0 0.0
        %1201 = vmatpush2.msra.mxu0 0.0
        %1202 = vmatprep.subr.mxu0 0.0
        %1203 = vmatpush2.msra.mxu0 0.0
        %1204 = vmatprep.subr.mxu0 0.0
        %1205 = vmatpush2.msra.mxu0 0.0
        %1206 = vmatprep.subr.mxu0 0.0
        %1207 = vmatpush2.msra.mxu0 0.0
        %1208 = vmatprep.subr.mxu0 0.0
        %1209 = vmatpush2.msra.mxu0 0.0
        %1210 = vmatprep.subr.mxu0 0.0
        %1211 = vmatpush2.msra.mxu0 0.0
        %1212 = vmatprep.mubr.f32.mxu0 0.0
        %1213 = vmatmul.mubr.f32.gmra.mxu0 %v1113
        %v1214 = vpop.f32.mrf.mxu0
        %v1215 = vadd.f32 0.0, %v1214
        %v1216 = vpop.f32.mrf.mxu0
        %v1217 = vadd.f32 0.0, %v1216
        %1218 = vmatprep.mubr.f32.mxu0 0.0
        %1219 = vmatmul.mubr.f32.gmra.mxu0 %v1116
        %v1220 = vpop.f32.mrf.mxu0
        %v1221 = vadd.f32 0.0, %v1220
        %v1222 = vpop.f32.mrf.mxu0
        %v1223 = vadd.f32 0.0, %v1222
        %1224 = vmatprep.mubr.f32.mxu0 0.0
        %1225 = vmatmul.mubr.f32.gmra.mxu0 %v1119
        %v1226 = vpop.f32.mrf.mxu0
        %v1227 = vadd.f32 0.0, %v1226
        %v1228 = vpop.f32.mrf.mxu0
        %v1229 = vadd.f32 0.0, %v1228
        %1230 = vmatprep.mubr.f32.mxu0 0.0
        %1231 = vmatmul.mubr.f32.gmra.mxu0 %v1122
        %v1232 = vpop.f32.mrf.mxu0
        %v1233 = vadd.f32 0.0, %v1232
        %v1234 = vpop.f32.mrf.mxu0
        %v1235 = vadd.f32 0.0, %v1234
        %1236 = vmatprep.mubr.f32.mxu0 0.0
        %1237 = vmatmul.mubr.f32.gmra.mxu0 %v1125
        %v1238 = vpop.f32.mrf.mxu0
        %v1239 = vadd.f32 0.0, %v1238
        %v1240 = vpop.f32.mrf.mxu0
        %v1241 = vadd.f32 0.0, %v1240
        %1242 = vmatprep.mubr.f32.mxu0 0.0
        %1243 = vmatmul.mubr.f32.gmra.mxu0 %v1128
        %v1244 = vpop.f32.mrf.mxu0
        %v1245 = vadd.f32 0.0, %v1244
        %v1246 = vpop.f32.mrf.mxu0
        %v1247 = vadd.f32 0.0, %v1246
        %1248 = vmatprep.mubr.f32.mxu0 0.0
        %1249 = vmatmul.mubr.f32.gmra.mxu0 %v1131
        %v1250 = vpop.f32.mrf.mxu0
        %v1251 = vadd.f32 0.0, %v1250
        %v1252 = vpop.f32.mrf.mxu0
        %v1253 = vadd.f32 0.0, %v1252
        %1254 = vmatprep.mubr.f32.mxu0 0.0
        %1255 = vmatmul.mubr.f32.gmra.mxu0 %v1134
        %v1256 = vpop.f32.mrf.mxu0
        %v1257 = vadd.f32 0.0, %v1256
        %v1258 = vpop.f32.mrf.mxu0
        %v1259 = vadd.f32 0.0, %v1258
        %1260 = vmatprep.mubr.f32.mxu0 0.0
        %1261 = vmatmul.mubr.f32.gmra.mxu0 %v1137
        %v1262 = vpop.f32.mrf.mxu0
        %v1263 = vadd.f32 0.0, %v1262
        %v1264 = vpop.f32.mrf.mxu0
        %v1265 = vadd.f32 0.0, %v1264
        %1266 = vmatprep.mubr.f32.mxu0 0.0
        %1267 = vmatmul.mubr.f32.gmra.mxu0 %v1140
        %v1268 = vpop.f32.mrf.mxu0
        %v1269 = vadd.f32 0.0, %v1268
        %v1270 = vpop.f32.mrf.mxu0
        %v1271 = vadd.f32 0.0, %v1270
        %1272 = vmatprep.mubr.f32.mxu0 0.0
        %1273 = vmatmul.mubr.f32.gmra.mxu0 %v1143
        %v1274 = vpop.f32.mrf.mxu0
        %v1275 = vadd.f32 0.0, %v1274
        %v1276 = vpop.f32.mrf.mxu0
        %v1277 = vadd.f32 0.0, %v1276
        %1278 = vmatprep.mubr.f32.mxu0 0.0
        %1279 = vmatmul.mubr.f32.gmra.mxu0 %v1146
        %v1280 = vpop.f32.mrf.mxu0
        %v1281 = vadd.f32 0.0, %v1280
        %v1282 = vpop.f32.mrf.mxu0
        %v1283 = vadd.f32 0.0, %v1282
        %1284 = vdwg.mxu0
        %v1285 = vadd.f32 %v1076, %v1215
        %v1286 = vadd.f32 %v1077, %v1217
        %v1287 = vadd.f32 %v1078, %v1221
        %v1288 = vadd.f32 %v1079, %v1223
        %v1289 = vadd.f32 %v1080, %v1227
        %v1290 = vadd.f32 %v1081, %v1229
        %v1291 = vadd.f32 %v1082, %v1233
        %v1292 = vadd.f32 %v1083, %v1235
        %v1293 = vadd.f32 %v1084, %v1239
        %v1294 = vadd.f32 %v1085, %v1241
        %v1295 = vadd.f32 %v1086, %v1245
        %v1296 = vadd.f32 %v1087, %v1247
        %v1297 = vadd.f32 %v1088, %v1251
        %v1298 = vadd.f32 %v1089, %v1253
        %v1299 = vadd.f32 %v1090, %v1257
        %v1300 = vadd.f32 %v1091, %v1259
        %v1301 = vadd.f32 %v1092, %v1263
        %v1302 = vadd.f32 %v1093, %v1265
        %v1303 = vadd.f32 %v1094, %v1269
        %v1304 = vadd.f32 %v1095, %v1271
        %v1305 = vadd.f32 %v1096, %v1275
        %v1306 = vadd.f32 %v1097, %v1277
        %v1307 = vadd.f32 %v1098, %v1281
        %v1308 = vadd.f32 %v1099, %v1283
        %v1309 = vld [vmem:[%s7] sm:$0xff]
        %v1310 = vld [vmem:[%s7 + $0x8] sm:$0xff]
        %v1311 = vld [vmem:[%s7 + $0x10] sm:$0xff]
        %v1312 = vld [vmem:[%s7 + $0x18] sm:$0xff]
        %v1313 = vld [vmem:[%s7 + $0x20] sm:$0xff]
        %v1314 = vld [vmem:[%s7 + $0x28] sm:$0xff]
        %v1315 = vld [vmem:[%s7 + $0x30] sm:$0xff]
        %v1316 = vld [vmem:[%s7 + $0x38] sm:$0xff]
        %v1317 = vld [vmem:[%s7 + $0x40] sm:$0xff]
        %v1318 = vld [vmem:[%s7 + $0x48] sm:$0xff]
        %v1319 = vld [vmem:[%s7 + $0x50] sm:$0xff]
        %v1320 = vld [vmem:[%s7 + $0x58] sm:$0xff]
        %1322 = vset.pattern.permute.xlu0 0
        %1323 = vperm.xlu0 %1322, %v1309
        %v1324 = vpop.permute.xlu0 %1323
        %1327 = vset.pattern.permute.xlu0 0
        %1328 = vperm.xlu0 %1327, %v1310
        %v1329 = vpop.permute.xlu0 %1328
        %1332 = vset.pattern.permute.xlu0 0
        %1333 = vperm.xlu0 %1332, %v1311
        %v1334 = vpop.permute.xlu0 %1333
        %1337 = vset.pattern.permute.xlu0 0
        %1338 = vperm.xlu0 %1337, %v1312
        %v1339 = vpop.permute.xlu0 %1338
        %1342 = vset.pattern.permute.xlu0 0
        %1343 = vperm.xlu0 %1342, %v1313
        %v1344 = vpop.permute.xlu0 %1343
        %1347 = vset.pattern.permute.xlu0 0
        %1348 = vperm.xlu0 %1347, %v1314
        %v1349 = vpop.permute.xlu0 %1348
        %1352 = vset.pattern.permute.xlu0 0
        %1353 = vperm.xlu0 %1352, %v1315
        %v1354 = vpop.permute.xlu0 %1353
        %1357 = vset.pattern.permute.xlu0 0
        %1358 = vperm.xlu0 %1357, %v1316
        %v1359 = vpop.permute.xlu0 %1358
        %1362 = vset.pattern.permute.xlu0 0
        %1363 = vperm.xlu0 %1362, %v1317
        %v1364 = vpop.permute.xlu0 %1363
        %1367 = vset.pattern.permute.xlu0 0
        %1368 = vperm.xlu0 %1367, %v1318
        %v1369 = vpop.permute.xlu0 %1368
        %1372 = vset.pattern.permute.xlu0 0
        %1373 = vperm.xlu0 %1372, %v1319
        %v1374 = vpop.permute.xlu0 %1373
        %1377 = vset.pattern.permute.xlu0 0
        %1378 = vperm.xlu0 %1377, %v1320
        %v1379 = vpop.permute.xlu0 %1378
        %v1381 = vadd.f32 %v1285, %v1324
        %v1382 = vadd.f32 %v1286, %v1324
        %v1383 = vadd.f32 %v1287, %v1329
        %v1384 = vadd.f32 %v1288, %v1329
        %v1385 = vadd.f32 %v1289, %v1334
        %v1386 = vadd.f32 %v1290, %v1334
        %v1387 = vadd.f32 %v1291, %v1339
        %v1388 = vadd.f32 %v1292, %v1339
        %v1389 = vadd.f32 %v1293, %v1344
        %v1390 = vadd.f32 %v1294, %v1344
        %v1391 = vadd.f32 %v1295, %v1349
        %v1392 = vadd.f32 %v1296, %v1349
        %v1393 = vadd.f32 %v1297, %v1354
        %v1394 = vadd.f32 %v1298, %v1354
        %v1395 = vadd.f32 %v1299, %v1359
        %v1396 = vadd.f32 %v1300, %v1359
        %v1397 = vadd.f32 %v1301, %v1364
        %v1398 = vadd.f32 %v1302, %v1364
        %v1399 = vadd.f32 %v1303, %v1369
        %v1400 = vadd.f32 %v1304, %v1369
        %v1401 = vadd.f32 %v1305, %v1374
        %v1402 = vadd.f32 %v1306, %v1374
        %v1403 = vadd.f32 %v1307, %v1379
        %v1404 = vadd.f32 %v1308, %v1379
        %v1405 = vmul.f32 %v1381, 0.5
        %v1406 = vmul.f32 %v1382, 0.5
        %v1407 = vmul.f32 %v1383, 0.5
        %v1408 = vmul.f32 %v1384, 0.5
        %v1409 = vmul.f32 %v1385, 0.5
        %v1410 = vmul.f32 %v1386, 0.5
        %v1411 = vtanh.pop %v1405
        %v1412 = vtanh.pop %v1406
        %v1413 = vtanh.pop %v1407
        %v1414 = vtanh.pop %v1408
        %v1415 = vtanh.pop %v1409
        %v1416 = vtanh.pop %v1410
        %v1417 = vadd.f32 %v1411, 1.0
        %v1418 = vadd.f32 %v1412, 1.0
        %v1419 = vadd.f32 %v1413, 1.0
        %v1420 = vadd.f32 %v1414, 1.0
        %v1421 = vadd.f32 %v1415, 1.0
        %v1422 = vadd.f32 %v1416, 1.0
        %v1423 = vmul.f32 %v1417, 0.5
        %v1424 = vmul.f32 %v1418, 0.5
        %v1425 = vmul.f32 %v1419, 0.5
        %v1426 = vmul.f32 %v1420, 0.5
        %v1427 = vmul.f32 %v1421, 0.5
        %v1428 = vmul.f32 %v1422, 0.5
        %v1429 = vmul.f32 %v1387, 0.5
        %v1430 = vmul.f32 %v1388, 0.5
        %v1431 = vmul.f32 %v1389, 0.5
        %v1432 = vmul.f32 %v1390, 0.5
        %v1433 = vmul.f32 %v1391, 0.5
        %v1434 = vmul.f32 %v1392, 0.5
        %v1435 = vtanh.pop %v1429
        %v1436 = vtanh.pop %v1430
        %v1437 = vtanh.pop %v1431
        %v1438 = vtanh.pop %v1432
        %v1439 = vtanh.pop %v1433
        %v1440 = vtanh.pop %v1434
        %v1441 = vadd.f32 %v1435, 1.0
        %v1442 = vadd.f32 %v1436, 1.0
        %v1443 = vadd.f32 %v1437, 1.0
        %v1444 = vadd.f32 %v1438, 1.0
        %v1445 = vadd.f32 %v1439, 1.0
        %v1446 = vadd.f32 %v1440, 1.0
        %v1447 = vmul.f32 %v1441, 0.5
        %v1448 = vmul.f32 %v1442, 0.5
        %v1449 = vmul.f32 %v1443, 0.5
        %v1450 = vmul.f32 %v1444, 0.5
        %v1451 = vmul.f32 %v1445, 0.5
        %v1452 = vmul.f32 %v1446, 0.5
        %v1453 = vtanh.pop %v1393
        %v1454 = vtanh.pop %v1394
        %v1455 = vtanh.pop %v1395
        %v1456 = vtanh.pop %v1396
        %v1457 = vtanh.pop %v1397
        %v1458 = vtanh.pop %v1398
        %v1459 = vmul.f32 %v1399, 0.5
        %v1460 = vmul.f32 %v1400, 0.5
        %v1461 = vmul.f32 %v1401, 0.5
        %v1462 = vmul.f32 %v1402, 0.5
        %v1463 = vmul.f32 %v1403, 0.5
        %v1464 = vmul.f32 %v1404, 0.5
        %v1465 = vtanh.pop %v1459
        %v1466 = vtanh.pop %v1460
        %v1467 = vtanh.pop %v1461
        %v1468 = vtanh.pop %v1462
        %v1469 = vtanh.pop %v1463
        %v1470 = vtanh.pop %v1464
        %v1471 = vadd.f32 %v1465, 1.0
        %v1472 = vadd.f32 %v1466, 1.0
        %v1473 = vadd.f32 %v1467, 1.0
        %v1474 = vadd.f32 %v1468, 1.0
        %v1475 = vadd.f32 %v1469, 1.0
        %v1476 = vadd.f32 %v1470, 1.0
        %v1477 = vmul.f32 %v1471, 0.5
        %v1478 = vmul.f32 %v1472, 0.5
        %v1479 = vmul.f32 %v1473, 0.5
        %v1480 = vmul.f32 %v1474, 0.5
        %v1481 = vmul.f32 %v1475, 0.5
        %v1482 = vmul.f32 %v1476, 0.5
        %v1483 = vmul.f32 %v1447, %v789
        %v1484 = vmul.f32 %v1448, %v790
        %v1485 = vmul.f32 %v1449, %v791
        %v1486 = vmul.f32 %v1450, %v792
        %v1487 = vmul.f32 %v1451, %v793
        %v1488 = vmul.f32 %v1452, %v794
        %v1489 = vmul.f32 %v1423, %v1453
        %v1490 = vmul.f32 %v1424, %v1454
        %v1491 = vmul.f32 %v1425, %v1455
        %v1492 = vmul.f32 %v1426, %v1456
        %v1493 = vmul.f32 %v1427, %v1457
        %v1494 = vmul.f32 %v1428, %v1458
        %v1495 = vadd.f32 %v1483, %v1489
        %v1496 = vadd.f32 %v1484, %v1490
        %v1497 = vadd.f32 %v1485, %v1491
        %v1498 = vadd.f32 %v1486, %v1492
        %v1499 = vadd.f32 %v1487, %v1493
        %v1500 = vadd.f32 %v1488, %v1494
        %v1501 = vtanh.pop %v1495
        %v1502 = vtanh.pop %v1496
        %v1503 = vtanh.pop %v1497
        %v1504 = vtanh.pop %v1498
        %v1505 = vtanh.pop %v1499
        %v1506 = vtanh.pop %v1500
        %v1507 = vmul.f32 %v1477, %v1501
        %v1508 = vmul.f32 %v1478, %v1502
        %v1509 = vmul.f32 %v1479, %v1503
        %v1510 = vmul.f32 %v1480, %v1504
        %v1511 = vmul.f32 %v1481, %v1505
        %v1512 = vmul.f32 %v1482, %v1506
        %v1513 = vld [vmem:[%s8] sm:$0xff]
        %v1514 = vld [vmem:[%s8 + $0x8] sm:$0xff]
        %v1515 = vld [vmem:[%s8 + $0x10] sm:$0xff]
        %v1516 = vld [vmem:[%s8 + $0x18] sm:$0xff]
        %v1517 = vld [vmem:[%s8 + $0x20] sm:$0xff]
        %v1518 = vld [vmem:[%s8 + $0x28] sm:$0xff]
        %v1519 = vld [vmem:[%s8 + $0x30] sm:$0xff]
        %v1520 = vld [vmem:[%s8 + $0x38] sm:$0xff]
        %v1521 = vld [vmem:[%s8 + $0x40] sm:$0xff]
        %v1522 = vld [vmem:[%s8 + $0x48] sm:$0xff]
        %v1523 = vld [vmem:[%s8 + $0x50] sm:$0xff]
        %v1524 = vld [vmem:[%s8 + $0x58] sm:$0xff]
        %v1526 = vsel %vm819, %v1513, 0
        %v1529 = vsel %vm819, %v1514, 0
        %v1532 = vsel %vm819, %v1515, 0
        %v1535 = vsel %vm819, %v1516, 0
        %v1538 = vsel %vm819, %v1517, 0
        %v1541 = vsel %vm819, %v1518, 0
        %v1544 = vsel %vm819, %v1519, 0
        %v1547 = vsel %vm819, %v1520, 0
        %v1550 = vsel %vm819, %v1521, 0
        %v1553 = vsel %vm819, %v1522, 0
        %v1556 = vsel %vm819, %v1523, 0
        %v1559 = vsel %vm819, %v1524, 0
        %1561 = vmatprep.subr.mxu0 0.0
        %1562 = vmatpush1.msra.mxu0 0.0
        %1563 = vmatprep.subr.mxu0 0.0
        %1564 = vmatpush1.msra.mxu0 0.0
        %1565 = vmatprep.subr.mxu0 0.0
        %1566 = vmatpush1.msra.mxu0 0.0
        %1567 = vmatprep.subr.mxu0 0.0
        %1568 = vmatpush1.msra.mxu0 0.0
        %1569 = vmatprep.subr.mxu0 0.0
        %1570 = vmatpush1.msra.mxu0 0.0
        %1571 = vmatprep.subr.mxu0 0.0
        %1572 = vmatpush1.msra.mxu0 0.0
        %1573 = vmatprep.subr.mxu0 0.0
        %1574 = vmatpush1.msra.mxu0 0.0
        %1575 = vmatprep.subr.mxu0 0.0
        %1576 = vmatpush1.msra.mxu0 0.0
        %1577 = vmatprep.subr.mxu0 0.0
        %1578 = vmatpush1.msra.mxu0 0.0
        %1579 = vmatprep.subr.mxu0 0.0
        %1580 = vmatpush1.msra.mxu0 0.0
        %1581 = vmatprep.subr.mxu0 0.0
        %1582 = vmatpush1.msra.mxu0 0.0
        %1583 = vmatprep.subr.mxu0 0.0
        %1584 = vmatpush1.msra.mxu0 0.0
        %1585 = vmatprep.subr.mxu0 0.0
        %1586 = vmatpush1.msra.mxu0 0.0
        %1587 = vmatprep.subr.mxu0 %v1512
        %1588 = vmatpush1.msra.mxu0 %v1511
        %1589 = vmatprep.subr.mxu0 %v1510
        %1590 = vmatpush1.msra.mxu0 %v1509
        %1591 = vmatprep.subr.mxu0 %v1508
        %1592 = vmatpush1.msra.mxu0 %v1507
        %1593 = vmatprep.subr.mxu0 0.0
        %1594 = vmatpush2.msra.mxu0 0.0
        %1595 = vmatprep.subr.mxu0 0.0
        %1596 = vmatpush2.msra.mxu0 0.0
        %1597 = vmatprep.subr.mxu0 0.0
        %1598 = vmatpush2.msra.mxu0 0.0
        %1599 = vmatprep.subr.mxu0 0.0
        %1600 = vmatpush2.msra.mxu0 0.0
        %1601 = vmatprep.subr.mxu0 0.0
        %1602 = vmatpush2.msra.mxu0 0.0
        %1603 = vmatprep.subr.mxu0 0.0
        %1604 = vmatpush2.msra.mxu0 0.0
        %1605 = vmatprep.subr.mxu0 0.0
        %1606 = vmatpush2.msra.mxu0 0.0
        %1607 = vmatprep.subr.mxu0 0.0
        %1608 = vmatpush2.msra.mxu0 0.0
        %1609 = vmatprep.subr.mxu0 0.0
        %1610 = vmatpush2.msra.mxu0 0.0
        %1611 = vmatprep.subr.mxu0 0.0
        %1612 = vmatpush2.msra.mxu0 0.0
        %1613 = vmatprep.subr.mxu0 0.0
        %1614 = vmatpush2.msra.mxu0 0.0
        %1615 = vmatprep.subr.mxu0 0.0
        %1616 = vmatpush2.msra.mxu0 0.0
        %1617 = vmatprep.subr.mxu0 0.0
        %1618 = vmatpush2.msra.mxu0 0.0
        %1619 = vmatprep.subr.mxu0 0.0
        %1620 = vmatpush2.msra.mxu0 0.0
        %1621 = vmatprep.subr.mxu0 0.0
        %1622 = vmatpush2.msra.mxu0 0.0
        %1623 = vmatprep.subr.mxu0 0.0
        %1624 = vmatpush2.msra.mxu0 0.0
        %1625 = vmatprep.mubr.f32.mxu0 0.0
        %1626 = vmatmul.mubr.f32.gmra.mxu0 %v1526
        %v1627 = vpop.f32.mrf.mxu0
        %v1628 = vadd.f32 %v923, %v1627
        %v1629 = vpop.f32.mrf.mxu0
        %v1630 = vadd.f32 %v925, %v1629
        %1631 = vmatprep.mubr.f32.mxu0 0.0
        %1632 = vmatmul.mubr.f32.gmra.mxu0 %v1529
        %v1633 = vpop.f32.mrf.mxu0
        %v1634 = vadd.f32 %v929, %v1633
        %v1635 = vpop.f32.mrf.mxu0
        %v1636 = vadd.f32 %v931, %v1635
        %1637 = vmatprep.mubr.f32.mxu0 0.0
        %1638 = vmatmul.mubr.f32.gmra.mxu0 %v1532
        %v1639 = vpop.f32.mrf.mxu0
        %v1640 = vadd.f32 %v935, %v1639
        %v1641 = vpop.f32.mrf.mxu0
        %v1642 = vadd.f32 %v937, %v1641
        %1643 = vmatprep.mubr.f32.mxu0 0.0
        %1644 = vmatmul.mubr.f32.gmra.mxu0 %v1535
        %v1645 = vpop.f32.mrf.mxu0
        %v1646 = vadd.f32 %v941, %v1645
        %v1647 = vpop.f32.mrf.mxu0
        %v1648 = vadd.f32 %v943, %v1647
        %1649 = vmatprep.mubr.f32.mxu0 0.0
        %1650 = vmatmul.mubr.f32.gmra.mxu0 %v1538
        %v1651 = vpop.f32.mrf.mxu0
        %v1652 = vadd.f32 %v947, %v1651
        %v1653 = vpop.f32.mrf.mxu0
        %v1654 = vadd.f32 %v949, %v1653
        %1655 = vmatprep.mubr.f32.mxu0 0.0
        %1656 = vmatmul.mubr.f32.gmra.mxu0 %v1541
        %v1657 = vpop.f32.mrf.mxu0
        %v1658 = vadd.f32 %v953, %v1657
        %v1659 = vpop.f32.mrf.mxu0
        %v1660 = vadd.f32 %v955, %v1659
        %1661 = vmatprep.mubr.f32.mxu0 0.0
        %1662 = vmatmul.mubr.f32.gmra.mxu0 %v1544
        %v1663 = vpop.f32.mrf.mxu0
        %v1664 = vadd.f32 %v959, %v1663
        %v1665 = vpop.f32.mrf.mxu0
        %v1666 = vadd.f32 %v961, %v1665
        %1667 = vmatprep.mubr.f32.mxu0 0.0
        %1668 = vmatmul.mubr.f32.gmra.mxu0 %v1547
        %v1669 = vpop.f32.mrf.mxu0
        %v1670 = vadd.f32 %v965, %v1669
        %v1671 = vpop.f32.mrf.mxu0
        %v1672 = vadd.f32 %v967, %v1671
        %1673 = vmatprep.mubr.f32.mxu0 0.0
        %1674 = vmatmul.mubr.f32.gmra.mxu0 %v1550
        %v1675 = vpop.f32.mrf.mxu0
        %v1676 = vadd.f32 %v971, %v1675
        %v1677 = vpop.f32.mrf.mxu0
        %v1678 = vadd.f32 %v973, %v1677
        %1679 = vmatprep.mubr.f32.mxu0 0.0
        %1680 = vmatmul.mubr.f32.gmra.mxu0 %v1553
        %v1681 = vpop.f32.mrf.mxu0
        %v1682 = vadd.f32 %v977, %v1681
        %v1683 = vpop.f32.mrf.mxu0
        %v1684 = vadd.f32 %v979, %v1683
        %1685 = vmatprep.mubr.f32.mxu0 0.0
        %1686 = vmatmul.mubr.f32.gmra.mxu0 %v1556
        %v1687 = vpop.f32.mrf.mxu0
        %v1688 = vadd.f32 %v983, %v1687
        %v1689 = vpop.f32.mrf.mxu0
        %v1690 = vadd.f32 %v985, %v1689
        %1691 = vmatprep.mubr.f32.mxu0 0.0
        %1692 = vmatmul.mubr.f32.gmra.mxu0 %v1559
        %v1693 = vpop.f32.mrf.mxu0
        %v1694 = vadd.f32 %v989, %v1693
        %v1695 = vpop.f32.mrf.mxu0
        %v1696 = vadd.f32 %v991, %v1695
        %1697 = vdwg.mxu0
        %v1698 = vld [vmem:[%s10] sm:$0xff]
        %v1699 = vld [vmem:[%s10 + $0x8] sm:$0xff]
        %v1700 = vld [vmem:[%s10 + $0x10] sm:$0xff]
        %v1701 = vld [vmem:[%s10 + $0x18] sm:$0xff]
        %v1702 = vld [vmem:[%s10 + $0x20] sm:$0xff]
        %v1703 = vld [vmem:[%s10 + $0x28] sm:$0xff]
        %v1704 = vld [vmem:[%s10 + $0x30] sm:$0xff]
        %v1705 = vld [vmem:[%s10 + $0x38] sm:$0xff]
        %v1706 = vld [vmem:[%s10 + $0x40] sm:$0xff]
        %v1707 = vld [vmem:[%s10 + $0x48] sm:$0xff]
        %v1708 = vld [vmem:[%s10 + $0x50] sm:$0xff]
        %v1709 = vld [vmem:[%s10 + $0x58] sm:$0xff]
        %1711 = vset.pattern.permute.xlu0 0
        %1712 = vperm.xlu0 %1711, %v1698
        %v1713 = vpop.permute.xlu0 %1712
        %1716 = vset.pattern.permute.xlu0 0
        %1717 = vperm.xlu0 %1716, %v1699
        %v1718 = vpop.permute.xlu0 %1717
        %1721 = vset.pattern.permute.xlu0 0
        %1722 = vperm.xlu0 %1721, %v1700
        %v1723 = vpop.permute.xlu0 %1722
        %1726 = vset.pattern.permute.xlu0 0
        %1727 = vperm.xlu0 %1726, %v1701
        %v1728 = vpop.permute.xlu0 %1727
        %1731 = vset.pattern.permute.xlu0 0
        %1732 = vperm.xlu0 %1731, %v1702
        %v1733 = vpop.permute.xlu0 %1732
        %1736 = vset.pattern.permute.xlu0 0
        %1737 = vperm.xlu0 %1736, %v1703
        %v1738 = vpop.permute.xlu0 %1737
        %1741 = vset.pattern.permute.xlu0 0
        %1742 = vperm.xlu0 %1741, %v1704
        %v1743 = vpop.permute.xlu0 %1742
        %1746 = vset.pattern.permute.xlu0 0
        %1747 = vperm.xlu0 %1746, %v1705
        %v1748 = vpop.permute.xlu0 %1747
        %1751 = vset.pattern.permute.xlu0 0
        %1752 = vperm.xlu0 %1751, %v1706
        %v1753 = vpop.permute.xlu0 %1752
        %1756 = vset.pattern.permute.xlu0 0
        %1757 = vperm.xlu0 %1756, %v1707
        %v1758 = vpop.permute.xlu0 %1757
        %1761 = vset.pattern.permute.xlu0 0
        %1762 = vperm.xlu0 %1761, %v1708
        %v1763 = vpop.permute.xlu0 %1762
        %1766 = vset.pattern.permute.xlu0 0
        %1767 = vperm.xlu0 %1766, %v1709
        %v1768 = vpop.permute.xlu0 %1767
        %v1770 = vadd.f32 %v1628, %v1713
        %v1771 = vadd.f32 %v1630, %v1713
        %v1772 = vadd.f32 %v1634, %v1718
        %v1773 = vadd.f32 %v1636, %v1718
        %v1774 = vadd.f32 %v1640, %v1723
        %v1775 = vadd.f32 %v1642, %v1723
        %v1776 = vadd.f32 %v1646, %v1728
        %v1777 = vadd.f32 %v1648, %v1728
        %v1778 = vadd.f32 %v1652, %v1733
        %v1779 = vadd.f32 %v1654, %v1733
        %v1780 = vadd.f32 %v1658, %v1738
        %v1781 = vadd.f32 %v1660, %v1738
        %v1782 = vadd.f32 %v1664, %v1743
        %v1783 = vadd.f32 %v1666, %v1743
        %v1784 = vadd.f32 %v1670, %v1748
        %v1785 = vadd.f32 %v1672, %v1748
        %v1786 = vadd.f32 %v1676, %v1753
        %v1787 = vadd.f32 %v1678, %v1753
        %v1788 = vadd.f32 %v1682, %v1758
        %v1789 = vadd.f32 %v1684, %v1758
        %v1790 = vadd.f32 %v1688, %v1763
        %v1791 = vadd.f32 %v1690, %v1763
        %v1792 = vadd.f32 %v1694, %v1768
        %v1793 = vadd.f32 %v1696, %v1768
        %v1794 = vmul.f32 %v1770, 0.5
        %v1795 = vmul.f32 %v1771, 0.5
        %v1796 = vmul.f32 %v1772, 0.5
        %v1797 = vmul.f32 %v1773, 0.5
        %v1798 = vmul.f32 %v1774, 0.5
        %v1799 = vmul.f32 %v1775, 0.5
        %v1800 = vtanh.pop %v1794
        %v1801 = vtanh.pop %v1795
        %v1802 = vtanh.pop %v1796
        %v1803 = vtanh.pop %v1797
        %v1804 = vtanh.pop %v1798
        %v1805 = vtanh.pop %v1799
        %v1806 = vadd.f32 %v1800, 1.0
        %v1807 = vadd.f32 %v1801, 1.0
        %v1808 = vadd.f32 %v1802, 1.0
        %v1809 = vadd.f32 %v1803, 1.0
        %v1810 = vadd.f32 %v1804, 1.0
        %v1811 = vadd.f32 %v1805, 1.0
        %v1812 = vmul.f32 %v1806, 0.5
        %v1813 = vmul.f32 %v1807, 0.5
        %v1814 = vmul.f32 %v1808, 0.5
        %v1815 = vmul.f32 %v1809, 0.5
        %v1816 = vmul.f32 %v1810, 0.5
        %v1817 = vmul.f32 %v1811, 0.5
        %v1818 = vmul.f32 %v1776, 0.5
        %v1819 = vmul.f32 %v1777, 0.5
        %v1820 = vmul.f32 %v1778, 0.5
        %v1821 = vmul.f32 %v1779, 0.5
        %v1822 = vmul.f32 %v1780, 0.5
        %v1823 = vmul.f32 %v1781, 0.5
        %v1824 = vtanh.pop %v1818
        %v1825 = vtanh.pop %v1819
        %v1826 = vtanh.pop %v1820
        %v1827 = vtanh.pop %v1821
        %v1828 = vtanh.pop %v1822
        %v1829 = vtanh.pop %v1823
        %v1830 = vadd.f32 %v1824, 1.0
        %v1831 = vadd.f32 %v1825, 1.0
        %v1832 = vadd.f32 %v1826, 1.0
        %v1833 = vadd.f32 %v1827, 1.0
        %v1834 = vadd.f32 %v1828, 1.0
        %v1835 = vadd.f32 %v1829, 1.0
        %v1836 = vmul.f32 %v1830, 0.5
        %v1837 = vmul.f32 %v1831, 0.5
        %v1838 = vmul.f32 %v1832, 0.5
        %v1839 = vmul.f32 %v1833, 0.5
        %v1840 = vmul.f32 %v1834, 0.5
        %v1841 = vmul.f32 %v1835, 0.5
        %v1842 = vtanh.pop %v1782
        %v1843 = vtanh.pop %v1783
        %v1844 = vtanh.pop %v1784
        %v1845 = vtanh.pop %v1785
        %v1846 = vtanh.pop %v1786
        %v1847 = vtanh.pop %v1787
        %v1848 = vmul.f32 %v1788, 0.5
        %v1849 = vmul.f32 %v1789, 0.5
        %v1850 = vmul.f32 %v1790, 0.5
        %v1851 = vmul.f32 %v1791, 0.5
        %v1852 = vmul.f32 %v1792, 0.5
        %v1853 = vmul.f32 %v1793, 0.5
        %v1854 = vtanh.pop %v1848
        %v1855 = vtanh.pop %v1849
        %v1856 = vtanh.pop %v1850
        %v1857 = vtanh.pop %v1851
        %v1858 = vtanh.pop %v1852
        %v1859 = vtanh.pop %v1853
        %v1860 = vadd.f32 %v1854, 1.0
        %v1861 = vadd.f32 %v1855, 1.0
        %v1862 = vadd.f32 %v1856, 1.0
        %v1863 = vadd.f32 %v1857, 1.0
        %v1864 = vadd.f32 %v1858, 1.0
        %v1865 = vadd.f32 %v1859, 1.0
        %v1866 = vmul.f32 %v1860, 0.5
        %v1867 = vmul.f32 %v1861, 0.5
        %v1868 = vmul.f32 %v1862, 0.5
        %v1869 = vmul.f32 %v1863, 0.5
        %v1870 = vmul.f32 %v1864, 0.5
        %v1871 = vmul.f32 %v1865, 0.5
        %v1872 = vmul.f32 %v1836, %v801
        %v1873 = vmul.f32 %v1837, %v802
        %v1874 = vmul.f32 %v1838, %v803
        %v1875 = vmul.f32 %v1839, %v804
        %v1876 = vmul.f32 %v1840, %v805
        %v1877 = vmul.f32 %v1841, %v806
        %v1878 = vmul.f32 %v1812, %v1842
        %v1879 = vmul.f32 %v1813, %v1843
        %v1880 = vmul.f32 %v1814, %v1844
        %v1881 = vmul.f32 %v1815, %v1845
        %v1882 = vmul.f32 %v1816, %v1846
        %v1883 = vmul.f32 %v1817, %v1847
        %v1884 = vadd.f32 %v1872, %v1878
        %v1885 = vadd.f32 %v1873, %v1879
        %v1886 = vadd.f32 %v1874, %v1880
        %v1887 = vadd.f32 %v1875, %v1881
        %v1888 = vadd.f32 %v1876, %v1882
        %v1889 = vadd.f32 %v1877, %v1883
        %v1890 = vtanh.pop %v1884
        %v1891 = vtanh.pop %v1885
        %v1892 = vtanh.pop %v1886
        %v1893 = vtanh.pop %v1887
        %v1894 = vtanh.pop %v1888
        %v1895 = vtanh.pop %v1889
        %v1896 = vmul.f32 %v1866, %v1890
        %v1897 = vmul.f32 %v1867, %v1891
        %v1898 = vmul.f32 %v1868, %v1892
        %v1899 = vmul.f32 %v1869, %v1893
        %v1900 = vmul.f32 %v1870, %v1894
        %v1901 = vmul.f32 %v1871, %v1895
        %v1902 = vld [vmem:[%s11] sm:$0xff]
        %v1903 = vld [vmem:[%s11 + $0x8] sm:$0xff]
        %v1904 = vld [vmem:[%s11 + $0x10] sm:$0xff]
        %1906 = vset.pattern.permute.xlu0 0
        %1907 = vperm.xlu0 %1906, %v1902
        %v1908 = vpop.permute.xlu0 %1907
        %1911 = vset.pattern.permute.xlu0 0
        %1912 = vperm.xlu0 %1911, %v1903
        %v1913 = vpop.permute.xlu0 %1912
        %1916 = vset.pattern.permute.xlu0 0
        %1917 = vperm.xlu0 %1916, %v1904
        %v1918 = vpop.permute.xlu0 %1917
        %v1920 = vmul.f32 %v1908, %v1896
        %v1921 = vmul.f32 %v1908, %v1897
        %v1922 = vmul.f32 %v1913, %v1898
        %v1923 = vmul.f32 %v1913, %v1899
        %v1924 = vmul.f32 %v1918, %v1900
        %v1925 = vmul.f32 %v1918, %v1901
        %v1926 = vadd.f32 %v1920, %v1922
        %v1927 = vadd.f32 %v1926, %v1924
        %v1928 = vrot.slane %v1927, 4
        %v1929 = vadd.f32 %v1927, %v1928
        %v1930 = vrot.slane %v1929, 2
        %v1931 = vadd.f32 %v1929, %v1930
        %v1932 = vrot.slane %v1931, 1
        %v1933 = vadd.f32 %v1931, %v1932
        %v1934 = vadd.f32 %v1921, %v1923
        %v1935 = vadd.f32 %v1934, %v1925
        %v1936 = vrot.slane %v1935, 4
        %v1937 = vadd.f32 %v1935, %v1936
        %v1938 = vrot.slane %v1937, 2
        %v1939 = vadd.f32 %v1937, %v1938
        %v1940 = vrot.slane %v1939, 1
        %v1941 = vadd.f32 %v1939, %v1940
        %v1942 = vld [vmem:[#allocation2] sm:$0x1]
        %1944 = vset.pattern.permute.xlu0 0
        %1945 = vperm.xlu0 %1944, %v1942
        %v1946 = vpop.permute.xlu0 %1945
        %v1948 = vlaneseq
        %v1949 = vshrl.u32 %v1948, 7
        %v1950 = vsub.s32 0, %v1949
        %v1951 = vrot.slane %v1946, %v1950
        %v1952 = vadd.f32 %v1933, %v1951
        %v1953 = vadd.f32 %v1941, %v1951
        %v1956 = vcombine.low %v1952, %v1953
        %v1958 = vunpack.c.l.s4 1966171168
        %v1959 = vunpack.c.0.s8 %v1958
        %v1960 = vlaneseq
        %v1961 = vshrl.u32 %v1960, 7
        %v1962 = vsub.s32 %v1959, %v1961
        %v1963 = vrot.slane %v1956, %v1962
        %v1965 = vunpack.c.l.s4 1966171168
        %v1966 = vunpack.c.0.s8 %v1965
        %v1967 = vlaneseq
        %v1968 = vshrl.u32 %v1967, 7
        %v1969 = vsub.s32 %v1966, %v1968
        %v1970 = vrot.slane %v1963, %v1969
        %v1972 = vlaneseq
        %vm1973 = vcmp.ge.s32.totalorder %v1972, 0
        %vm1974 = vcmp.lt.s32.totalorder %v1972, 256
        %vm1975 = vmand %vm1973, %vm1974
        %1976 = vst.msk [vmem:[%s776] sm:$0x3] %vm1975, %v1970
        %1977 = vst [vmem:[%s745] sm:$0xff] %v1507
        %1978 = vst [vmem:[%s745 + $0x8] sm:$0xff] %v1508
        %1979 = vst [vmem:[%s745 + $0x10] sm:$0xff] %v1509
        %1980 = vst [vmem:[%s745 + $0x18] sm:$0xff] %v1510
        %1981 = vst [vmem:[%s745 + $0x20] sm:$0xff] %v1511
        %1982 = vst [vmem:[%s745 + $0x28] sm:$0xff] %v1512
        %1983 = vst [vmem:[%s751] sm:$0xff] %v1495
        %1984 = vst [vmem:[%s751 + $0x8] sm:$0xff] %v1496
        %1985 = vst [vmem:[%s751 + $0x10] sm:$0xff] %v1497
        %1986 = vst [vmem:[%s751 + $0x18] sm:$0xff] %v1498
        %1987 = vst [vmem:[%s751 + $0x20] sm:$0xff] %v1499
        %1988 = vst [vmem:[%s751 + $0x28] sm:$0xff] %v1500
        %1989 = vst [vmem:[%s757] sm:$0xff] %v1896
        %1990 = vst [vmem:[%s757 + $0x8] sm:$0xff] %v1897
        %1991 = vst [vmem:[%s757 + $0x10] sm:$0xff] %v1898
        %1992 = vst [vmem:[%s757 + $0x18] sm:$0xff] %v1899
        %1993 = vst [vmem:[%s757 + $0x20] sm:$0xff] %v1900
        %1994 = vst [vmem:[%s757 + $0x28] sm:$0xff] %v1901
        %1995 = vst [vmem:[%s763] sm:$0xff] %v1884
        %1996 = vst [vmem:[%s763 + $0x8] sm:$0xff] %v1885
        %1997 = vst [vmem:[%s763 + $0x10] sm:$0xff] %v1886
        %1998 = vst [vmem:[%s763 + $0x18] sm:$0xff] %v1887
        %1999 = vst [vmem:[%s763 + $0x20] sm:$0xff] %v1888
        %2000 = vst [vmem:[%s763 + $0x28] sm:$0xff] %v1889
        %s2001 = smul.u32 2, %s31
        %p2002 = scmp.lt.s32.totalorder %s2001, 3
        %s2003 = scalar_select %p2002, %s2001, 3
        %s2004 = scalar_lea.vmem %s13, %s2003
        %s2005 = sand.u32 %s363, 1
        %s2006 = sand.u32 %s363, 1
        %s2007 = smul.addr %s2006, 48
        %s2008 = scalar_lea.vmem [#allocation7], %s2007
        %s2009 = sand.u32 %s389, 1
        %s2010 = sand.u32 %s389, 1
        %s2011 = smul.addr %s2010, 48
        %s2012 = scalar_lea.vmem [#allocation8], %s2011
        %s2013 = sand.u32 %s415, 1
        %s2014 = sand.u32 %s415, 1
        %s2015 = smul.addr %s2014, 48
        %s2016 = scalar_lea.vmem [#allocation9], %s2015
        %s2017 = sand.u32 %s441, 1
        %s2018 = sand.u32 %s441, 1
        %s2019 = smul.addr %s2018, 48
        %s2020 = scalar_lea.vmem [#allocation10], %s2019
        // Predicated region
        $region165: #{_forward_jit.1} parent=147 // pred_check
          %p2021 = pneg %p347
        $region166: #{_forward_jit.1} parent=147 // pred_check_branch
          %2023 = sbr.rel (%p2021) target = $region168
        $region167: #{_forward_jit.1} parent=147 // pred_region
          %s2024 = smul.u32 2, %s31
        $region168: #{_forward_jit.1} parent=147 // pred_fallthru
          _
        // Predicated region
        $region169: #{_forward_jit.1} parent=147 // pred_check
          %p2025 = pneg %p373
        $region170: #{_forward_jit.1} parent=147 // pred_check_branch
          %2027 = sbr.rel (%p2025) target = $region172
        $region171: #{_forward_jit.1} parent=147 // pred_region
          %s2028 = smul.u32 2, %s31
          %s2029 = smul.addr %s2028, 8
          %s2030 = scalar_lea.vmem %s14, %s2029
          // Predicated region
          $region173: #{_forward_jit.1} parent=171 // pred_check
            _
          $region174: #{_forward_jit.1} parent=171 // pred_check_branch
            %2032 = sbr.rel (0) target = $region176
          $region175: #{_forward_jit.1} parent=171 // pred_region
            // Predicated region
            $region177: #{_forward_jit.1} parent=175 // pred_check
              _
            $region178: #{_forward_jit.1} parent=175 // pred_check_branch
              %2034 = sbr.rel (0) target = $region180
            $region179: #{_forward_jit.1} parent=175 // pred_region
              loop: start=0, step=1, limit=1
              $region181: #{_forward_jit.1} parent=179 // loop_pre_header
                _
              $region182: #{_forward_jit.1} parent=179 // loop_header
                %s2036 = sphi 0, %s2040
                %p2037 = scmp.ge.s32.totalorder %s2036, 1
                %s2041 = sphi %s2008, %s2008
                %s2042 = sphi %s2030, %s2030
              $region183: #{_forward_jit.1} parent=179 // loop_header_branch
                %2039 = sbr.rel (%p2037) target = $region187
              $region184: #{_forward_jit.1} parent=179 // loop_body
                %v2043 = vld [vmem:[%s2041] sm:$0xff]
                %2044 = vst [vmem:[%s2042] sm:$0xff] %v2043
                %v2045 = vld [vmem:[%s2041 + $0x8] sm:$0xff]
                %2046 = vst [vmem:[%s2042 + $0x8] sm:$0xff] %v2045
                %v2047 = vld [vmem:[%s2041 + $0x10] sm:$0xff]
                %2048 = vst [vmem:[%s2042 + $0x20] sm:$0xff] %v2047
                %v2049 = vld [vmem:[%s2041 + $0x18] sm:$0xff]
                %2050 = vst [vmem:[%s2042 + $0x28] sm:$0xff] %v2049
                %v2051 = vld [vmem:[%s2041 + $0x20] sm:$0xff]
                %2052 = vst [vmem:[%s2042 + $0x40] sm:$0xff] %v2051
                %v2053 = vld [vmem:[%s2041 + $0x28] sm:$0xff]
                %2054 = vst [vmem:[%s2042 + $0x48] sm:$0xff] %v2053
              $region185: #{_forward_jit.1} parent=179 // loop_footer
                %s2040 = sadd.s32 1, %s2036
              $region186: #{_forward_jit.1} parent=179 // loop_footer_branch
                %2035 = sbr.rel target = $region182
              $region187: #{_forward_jit.1} parent=179 // loop_exit
                _
            $region180: #{_forward_jit.1} parent=175 // pred_fallthru
              _
            // Predicated region
            $region188: #{_forward_jit.1} parent=175 // pred_check
              _
            $region189: #{_forward_jit.1} parent=175 // pred_check_branch
              %2056 = sbr.rel target = $region191
            $region190: #{_forward_jit.1} parent=175 // pred_region
              _
            $region191: #{_forward_jit.1} parent=175 // pred_fallthru
              _
          $region176: #{_forward_jit.1} parent=171 // pred_fallthru
            _
          %2057 = vnop
        $region172: #{_forward_jit.1} parent=147 // pred_fallthru
          _
        // Predicated region
        $region192: #{_forward_jit.1} parent=147 // pred_check
          %p2058 = pneg %p399
        $region193: #{_forward_jit.1} parent=147 // pred_check_branch
          %2060 = sbr.rel (%p2058) target = $region195
        $region194: #{_forward_jit.1} parent=147 // pred_region
          %s2061 = smul.u32 2, %s31
          %s2062 = smul.addr %s2061, 8
          %s2063 = scalar_lea.vmem %s15, %s2062
          // Predicated region
          $region196: #{_forward_jit.1} parent=194 // pred_check
            _
          $region197: #{_forward_jit.1} parent=194 // pred_check_branch
            %2065 = sbr.rel (0) target = $region199
          $region198: #{_forward_jit.1} parent=194 // pred_region
            // Predicated region
            $region200: #{_forward_jit.1} parent=198 // pred_check
              _
            $region201: #{_forward_jit.1} parent=198 // pred_check_branch
              %2067 = sbr.rel (0) target = $region203
            $region202: #{_forward_jit.1} parent=198 // pred_region
              loop: start=0, step=1, limit=1
              $region204: #{_forward_jit.1} parent=202 // loop_pre_header
                _
              $region205: #{_forward_jit.1} parent=202 // loop_header
                %s2069 = sphi 0, %s2073
                %p2070 = scmp.ge.s32.totalorder %s2069, 1
                %s2074 = sphi %s2012, %s2012
                %s2075 = sphi %s2063, %s2063
              $region206: #{_forward_jit.1} parent=202 // loop_header_branch
                %2072 = sbr.rel (%p2070) target = $region210
              $region207: #{_forward_jit.1} parent=202 // loop_body
                %v2076 = vld [vmem:[%s2074] sm:$0xff]
                %2077 = vst [vmem:[%s2075] sm:$0xff] %v2076
                %v2078 = vld [vmem:[%s2074 + $0x8] sm:$0xff]
                %2079 = vst [vmem:[%s2075 + $0x8] sm:$0xff] %v2078
                %v2080 = vld [vmem:[%s2074 + $0x10] sm:$0xff]
                %2081 = vst [vmem:[%s2075 + $0x20] sm:$0xff] %v2080
                %v2082 = vld [vmem:[%s2074 + $0x18] sm:$0xff]
                %2083 = vst [vmem:[%s2075 + $0x28] sm:$0xff] %v2082
                %v2084 = vld [vmem:[%s2074 + $0x20] sm:$0xff]
                %2085 = vst [vmem:[%s2075 + $0x40] sm:$0xff] %v2084
                %v2086 = vld [vmem:[%s2074 + $0x28] sm:$0xff]
                %2087 = vst [vmem:[%s2075 + $0x48] sm:$0xff] %v2086
              $region208: #{_forward_jit.1} parent=202 // loop_footer
                %s2073 = sadd.s32 1, %s2069
              $region209: #{_forward_jit.1} parent=202 // loop_footer_branch
                %2068 = sbr.rel target = $region205
              $region210: #{_forward_jit.1} parent=202 // loop_exit
                _
            $region203: #{_forward_jit.1} parent=198 // pred_fallthru
              _
            // Predicated region
            $region211: #{_forward_jit.1} parent=198 // pred_check
              _
            $region212: #{_forward_jit.1} parent=198 // pred_check_branch
              %2089 = sbr.rel target = $region214
            $region213: #{_forward_jit.1} parent=198 // pred_region
              _
            $region214: #{_forward_jit.1} parent=198 // pred_fallthru
              _
          $region199: #{_forward_jit.1} parent=194 // pred_fallthru
            _
          %2090 = vnop
        $region195: #{_forward_jit.1} parent=147 // pred_fallthru
          _
        // Predicated region
        $region215: #{_forward_jit.1} parent=147 // pred_check
          %p2091 = pneg %p425
        $region216: #{_forward_jit.1} parent=147 // pred_check_branch
          %2093 = sbr.rel (%p2091) target = $region218
        $region217: #{_forward_jit.1} parent=147 // pred_region
          %s2094 = smul.u32 2, %s31
          %s2095 = smul.addr %s2094, 8
          %s2096 = scalar_lea.vmem %s16, %s2095
          // Predicated region
          $region219: #{_forward_jit.1} parent=217 // pred_check
            _
          $region220: #{_forward_jit.1} parent=217 // pred_check_branch
            %2098 = sbr.rel (0) target = $region222
          $region221: #{_forward_jit.1} parent=217 // pred_region
            // Predicated region
            $region223: #{_forward_jit.1} parent=221 // pred_check
              _
            $region224: #{_forward_jit.1} parent=221 // pred_check_branch
              %2100 = sbr.rel (0) target = $region226
            $region225: #{_forward_jit.1} parent=221 // pred_region
              loop: start=0, step=1, limit=1
              $region227: #{_forward_jit.1} parent=225 // loop_pre_header
                _
              $region228: #{_forward_jit.1} parent=225 // loop_header
                %s2102 = sphi 0, %s2106
                %p2103 = scmp.ge.s32.totalorder %s2102, 1
                %s2107 = sphi %s2016, %s2016
                %s2108 = sphi %s2096, %s2096
              $region229: #{_forward_jit.1} parent=225 // loop_header_branch
                %2105 = sbr.rel (%p2103) target = $region233
              $region230: #{_forward_jit.1} parent=225 // loop_body
                %v2109 = vld [vmem:[%s2107] sm:$0xff]
                %2110 = vst [vmem:[%s2108] sm:$0xff] %v2109
                %v2111 = vld [vmem:[%s2107 + $0x8] sm:$0xff]
                %2112 = vst [vmem:[%s2108 + $0x8] sm:$0xff] %v2111
                %v2113 = vld [vmem:[%s2107 + $0x10] sm:$0xff]
                %2114 = vst [vmem:[%s2108 + $0x20] sm:$0xff] %v2113
                %v2115 = vld [vmem:[%s2107 + $0x18] sm:$0xff]
                %2116 = vst [vmem:[%s2108 + $0x28] sm:$0xff] %v2115
                %v2117 = vld [vmem:[%s2107 + $0x20] sm:$0xff]
                %2118 = vst [vmem:[%s2108 + $0x40] sm:$0xff] %v2117
                %v2119 = vld [vmem:[%s2107 + $0x28] sm:$0xff]
                %2120 = vst [vmem:[%s2108 + $0x48] sm:$0xff] %v2119
              $region231: #{_forward_jit.1} parent=225 // loop_footer
                %s2106 = sadd.s32 1, %s2102
              $region232: #{_forward_jit.1} parent=225 // loop_footer_branch
                %2101 = sbr.rel target = $region228
              $region233: #{_forward_jit.1} parent=225 // loop_exit
                _
            $region226: #{_forward_jit.1} parent=221 // pred_fallthru
              _
            // Predicated region
            $region234: #{_forward_jit.1} parent=221 // pred_check
              _
            $region235: #{_forward_jit.1} parent=221 // pred_check_branch
              %2122 = sbr.rel target = $region237
            $region236: #{_forward_jit.1} parent=221 // pred_region
              _
            $region237: #{_forward_jit.1} parent=221 // pred_fallthru
              _
          $region222: #{_forward_jit.1} parent=217 // pred_fallthru
            _
          %2123 = vnop
        $region218: #{_forward_jit.1} parent=147 // pred_fallthru
          _
        // Predicated region
        $region238: #{_forward_jit.1} parent=147 // pred_check
          %p2124 = pneg %p451
        $region239: #{_forward_jit.1} parent=147 // pred_check_branch
          %2126 = sbr.rel (%p2124) target = $region241
        $region240: #{_forward_jit.1} parent=147 // pred_region
          %s2127 = smul.u32 2, %s31
          %s2128 = smul.addr %s2127, 8
          %s2129 = scalar_lea.vmem %s17, %s2128
          // Predicated region
          $region242: #{_forward_jit.1} parent=240 // pred_check
            _
          $region243: #{_forward_jit.1} parent=240 // pred_check_branch
            %2131 = sbr.rel (0) target = $region245
          $region244: #{_forward_jit.1} parent=240 // pred_region
            // Predicated region
            $region246: #{_forward_jit.1} parent=244 // pred_check
              _
            $region247: #{_forward_jit.1} parent=244 // pred_check_branch
              %2133 = sbr.rel (0) target = $region249
            $region248: #{_forward_jit.1} parent=244 // pred_region
              loop: start=0, step=1, limit=1
              $region250: #{_forward_jit.1} parent=248 // loop_pre_header
                _
              $region251: #{_forward_jit.1} parent=248 // loop_header
                %s2135 = sphi 0, %s2139
                %p2136 = scmp.ge.s32.totalorder %s2135, 1
                %s2140 = sphi %s2020, %s2020
                %s2141 = sphi %s2129, %s2129
              $region252: #{_forward_jit.1} parent=248 // loop_header_branch
                %2138 = sbr.rel (%p2136) target = $region256
              $region253: #{_forward_jit.1} parent=248 // loop_body
                %v2142 = vld [vmem:[%s2140] sm:$0xff]
                %2143 = vst [vmem:[%s2141] sm:$0xff] %v2142
                %v2144 = vld [vmem:[%s2140 + $0x8] sm:$0xff]
                %2145 = vst [vmem:[%s2141 + $0x8] sm:$0xff] %v2144
                %v2146 = vld [vmem:[%s2140 + $0x10] sm:$0xff]
                %2147 = vst [vmem:[%s2141 + $0x20] sm:$0xff] %v2146
                %v2148 = vld [vmem:[%s2140 + $0x18] sm:$0xff]
                %2149 = vst [vmem:[%s2141 + $0x28] sm:$0xff] %v2148
                %v2150 = vld [vmem:[%s2140 + $0x20] sm:$0xff]
                %2151 = vst [vmem:[%s2141 + $0x40] sm:$0xff] %v2150
                %v2152 = vld [vmem:[%s2140 + $0x28] sm:$0xff]
                %2153 = vst [vmem:[%s2141 + $0x48] sm:$0xff] %v2152
              $region254: #{_forward_jit.1} parent=248 // loop_footer
                %s2139 = sadd.s32 1, %s2135
              $region255: #{_forward_jit.1} parent=248 // loop_footer_branch
                %2134 = sbr.rel target = $region251
              $region256: #{_forward_jit.1} parent=248 // loop_exit
                _
            $region249: #{_forward_jit.1} parent=244 // pred_fallthru
              _
            // Predicated region
            $region257: #{_forward_jit.1} parent=244 // pred_check
              _
            $region258: #{_forward_jit.1} parent=244 // pred_check_branch
              %2155 = sbr.rel target = $region260
            $region259: #{_forward_jit.1} parent=244 // pred_region
              _
            $region260: #{_forward_jit.1} parent=244 // pred_fallthru
              _
          $region245: #{_forward_jit.1} parent=240 // pred_fallthru
            _
          %2156 = vnop
        $region241: #{_forward_jit.1} parent=147 // pred_fallthru
          _
      $region148: #{_forward_jit.1} parent=5 // pred_fallthru
        _
      %p2157 = scmp.le.s32.totalorder 2, %s26
      // Predicated region
      $region261: #{_forward_jit.1} parent=5 // pred_check
        %p2158 = pneg %p2157
      $region262: #{_forward_jit.1} parent=5 // pred_check_branch
        %2160 = sbr.rel (%p2158) target = $region264
      $region263: #{_forward_jit.1} parent=5 // pred_region
        %s2161 = ssub.s32 %s26, 2
        // Predicated region
        $region265: #{_forward_jit.1} parent=263 // pred_check
          %p2162 = pneg %p353
        $region266: #{_forward_jit.1} parent=263 // pred_check_branch
          %2164 = sbr.rel (%p2162) target = $region268
        $region267: #{_forward_jit.1} parent=263 // pred_region
          %s2165 = smul.u32 2, %s32
          %p2166 = scmp.lt.s32.totalorder %s2165, 3
          %s2167 = scalar_select %p2166, %s2165, 3
          %s2168 = scalar_lea.vmem %s13, %s2167
        $region268: #{_forward_jit.1} parent=263 // pred_fallthru
          _
        // Predicated region
        $region269: #{_forward_jit.1} parent=263 // pred_check
          %p2169 = pneg %p379
        $region270: #{_forward_jit.1} parent=263 // pred_check_branch
          %2171 = sbr.rel (%p2169) target = $region272
        $region271: #{_forward_jit.1} parent=263 // pred_region
          %s2172 = sand.u32 %s364, 1
          %s2173 = sand.u32 %s364, 1
          %s2174 = smul.addr %s2173, 48
          %s2175 = scalar_lea.vmem [#allocation7], %s2174
        $region272: #{_forward_jit.1} parent=263 // pred_fallthru
          _
        // Predicated region
        $region273: #{_forward_jit.1} parent=263 // pred_check
          %p2176 = pneg %p405
        $region274: #{_forward_jit.1} parent=263 // pred_check_branch
          %2178 = sbr.rel (%p2176) target = $region276
        $region275: #{_forward_jit.1} parent=263 // pred_region
          %s2179 = sand.u32 %s390, 1
          %s2180 = sand.u32 %s390, 1
          %s2181 = smul.addr %s2180, 48
          %s2182 = scalar_lea.vmem [#allocation8], %s2181
        $region276: #{_forward_jit.1} parent=263 // pred_fallthru
          _
        // Predicated region
        $region277: #{_forward_jit.1} parent=263 // pred_check
          %p2183 = pneg %p431
        $region278: #{_forward_jit.1} parent=263 // pred_check_branch
          %2185 = sbr.rel (%p2183) target = $region280
        $region279: #{_forward_jit.1} parent=263 // pred_region
          %s2186 = sand.u32 %s416, 1
          %s2187 = sand.u32 %s416, 1
          %s2188 = smul.addr %s2187, 48
          %s2189 = scalar_lea.vmem [#allocation9], %s2188
        $region280: #{_forward_jit.1} parent=263 // pred_fallthru
          _
        // Predicated region
        $region281: #{_forward_jit.1} parent=263 // pred_check
          %p2190 = pneg %p457
        $region282: #{_forward_jit.1} parent=263 // pred_check_branch
          %2192 = sbr.rel (%p2190) target = $region284
        $region283: #{_forward_jit.1} parent=263 // pred_region
          %s2193 = sand.u32 %s442, 1
          %s2194 = sand.u32 %s442, 1
          %s2195 = smul.addr %s2194, 48
          %s2196 = scalar_lea.vmem [#allocation10], %s2195
        $region284: #{_forward_jit.1} parent=263 // pred_fallthru
          _
      $region264: #{_forward_jit.1} parent=5 // pred_fallthru
        _
    $region6: #{_forward_jit.1} parent=1 // loop_footer
      %s30 = sadd.s32 1, %s26
    $region7: #{_forward_jit.1} parent=1 // loop_footer_branch
      %25 = sbr.rel target = $region3
    $region8: #{_forward_jit.1} parent=1 // loop_exit
      _

</llo_original>
